<compile_context>
chip_gen: v7x
topology: tpu7x:2x2x1
jax: 0.10.0
libtpu: 0.0.40
codegen_flags: <defaults>
</compile_context>

<pallas_src>
import functools

import jax
import jax.numpy as jnp
from jax.experimental import pallas as pl
from jax.experimental.pallas import tpu as pltpu

_LANE = 128


def _round_up(x, m):
    return (x + m - 1) // m * m


# ---------------------------------------------------------------------------
# VMEM budgeting (generation-aware).
# ---------------------------------------------------------------------------
def _fused_vmem_budget():
    """(usable fused budget, vmem_limit_bytes) derived from the chip's VMEM."""
    try:
        cap = int(pltpu.get_tpu_info().vmem_capacity_bytes)
    except Exception:
        cap = 64 * 1024 * 1024  # conservative (v7x-sized) if the query is unavailable
    if cap >= 96 * 1024 * 1024:          # v5e / v6e: 128 MiB physical
        budget = 96 * 1024 * 1024
    else:                                # v7x: 64 MiB physical
        budget = 46 * 1024 * 1024
    limit = min(cap, budget + 12 * 1024 * 1024)
    return budget, limit


def _fused_vmem_need(n_pad, dims_pad, itemsize):
    """Conservative VMEM estimate for the single-buffered fused kernel."""
    d_max = max(dims_pad)
    need = 2 * n_pad * n_pad * itemsize                      # adj buffer + in-kernel value
    need += n_pad * dims_pad[0] * itemsize                   # x buffer
    need += n_pad * dims_pad[-1] * 4                         # f32 output buffer
    need += 3 * n_pad * d_max * 4                            # f32 intermediates (t, h, relu)
    need += 2 * sum(dims_pad[i] * dims_pad[i + 1] * itemsize
                    for i in range(len(dims_pad) - 1))       # weights (+ f32 upcast)
    return need


# ---------------------------------------------------------------------------
# Path 1: fused whole-network kernel (everything VMEM-resident, one launch).
# ---------------------------------------------------------------------------
def _fused_gcn_kernel(adj_ref, x_ref, *rest, num_layers):
    """All GCN layers in one invocation.  rest = (w_0 ... w_{L-1}, o_ref).

    Weights arrive pre-transposed as (d_in_pad, d_out_pad).  Aggregation
    matmul inputs use the storage dtype (f32 or bf16); accumulation and the
    weight application / ReLU stay in f32.
    """
    w_refs = rest[:num_layers]
    o_ref = rest[num_layers]

    cdt = adj_ref.dtype
    adj = adj_ref[...]
    h = x_ref[...]
    for ln in range(num_layers):
        w = w_refs[ln][...]
        if w.shape[-1] < h.shape[-1]:
            # d_out < d_in: transform first, aggregate the narrower features.
            t = jnp.dot(h.astype(cdt), w, preferred_element_type=jnp.float32)
            h = jnp.dot(adj, t.astype(cdt), preferred_element_type=jnp.float32)
        else:
            t = jnp.dot(adj, h.astype(cdt), preferred_element_type=jnp.float32)
            h = jnp.dot(t, w.astype(jnp.float32),
                        preferred_element_type=jnp.float32)
        if ln != num_layers - 1:
            h = jnp.maximum(h, 0.0)
    o_ref[...] = h.astype(o_ref.dtype)


def _fused_forward(adj_p, x_p, ws_p, vmem_limit_bytes):
    n_pad = adj_p.shape[0]
    d_out_pad = ws_p[-1].shape[1]
    kernel = functools.partial(_fused_gcn_kernel, num_layers=len(ws_p))
    # Gridless call: single invocation, whole operands resident in VMEM,
    # no pipeline double-buffering.
    return pl.pallas_call(
        kernel,
        out_shape=jax.ShapeDtypeStruct((n_pad, d_out_pad), jnp.float32),
        compiler_params=pltpu.CompilerParams(
            vmem_limit_bytes=int(vmem_limit_bytes)),
    )(adj_p, x_p, *ws_p)


# ---------------------------------------------------------------------------
# Path 2: tiled per-layer kernels (large graphs, adj streamed from HBM).
# ---------------------------------------------------------------------------
def _agg_kernel(adj_ref, x_ref, o_ref, acc_ref, *, apply_relu):
    """Accumulate (adj @ x) over the k axis; ReLU/store on the last k step."""
    k = pl.program_id(1)

    @pl.when(k == 0)
    def _():
        acc_ref[...] = jnp.zeros_like(acc_ref)

    acc_ref[...] += jnp.dot(adj_ref[...], x_ref[...],
                            preferred_element_type=jnp.float32)

    @pl.when(k == pl.num_programs(1) - 1)
    def _():
        h = acc_ref[...]
        if apply_relu:
            h = jnp.maximum(h, 0.0)
        o_ref[...] = h.astype(o_ref.dtype)


def _agg_w_kernel(adj_ref, x_ref, w_ref, o_ref, acc_ref, *, apply_relu):
    """Accumulate (adj @ x) over k; apply W (f32) + optional ReLU on last k."""
    k = pl.program_id(1)

    @pl.when(k == 0)
    def _():
        acc_ref[...] = jnp.zeros_like(acc_ref)

    acc_ref[...] += jnp.dot(adj_ref[...], x_ref[...],
                            preferred_element_type=jnp.float32)

    @pl.when(k == pl.num_programs(1) - 1)
    def _():
        h = jnp.dot(acc_ref[...], w_ref[...].astype(jnp.float32),
                    preferred_element_type=jnp.float32)
        if apply_relu:
            h = jnp.maximum(h, 0.0)
        o_ref[...] = h.astype(o_ref.dtype)


def _xw_kernel(x_ref, w_ref, o_ref):
    """Row-tiled h @ W (pre-transform for narrow-output layers)."""
    o_ref[...] = jnp.dot(x_ref[...], w_ref[...],
                         preferred_element_type=jnp.float32).astype(o_ref.dtype)


def _rows_matmul(h_p, w_p, *, out_dtype, tm):
    n_pad, d_in_p = h_p.shape
    d_out_p = w_p.shape[1]
    return pl.pallas_call(
        _xw_kernel,
        out_shape=jax.ShapeDtypeStruct((n_pad, d_out_p), out_dtype),
        grid=(n_pad // tm,),
        in_specs=[pl.BlockSpec((tm, d_in_p), lambda i: (i, 0)),
                  pl.BlockSpec((d_in_p, d_out_p), lambda i: (0, 0))],
        out_specs=pl.BlockSpec((tm, d_out_p), lambda i: (i, 0)),
        compiler_params=pltpu.CompilerParams(
            dimension_semantics=("parallel",)),
    )(h_p, w_p)


def _aggregate(adj_p, x_p, *, apply_relu, out_dtype, tm, tk):
    n_pad = adj_p.shape[0]
    d = x_p.shape[1]
    kernel = functools.partial(_agg_kernel, apply_relu=apply_relu)
    return pl.pallas_call(
        kernel,
        out_shape=jax.ShapeDtypeStruct((n_pad, d), out_dtype),
        grid=(n_pad // tm, n_pad // tk),
        in_specs=[pl.BlockSpec((tm, tk), lambda i, k: (i, k)),
                  pl.BlockSpec((tk, d), lambda i, k: (k, 0))],
        out_specs=pl.BlockSpec((tm, d), lambda i, k: (i, 0)),
        scratch_shapes=[pltpu.VMEM((tm, d), jnp.float32)],
        compiler_params=pltpu.CompilerParams(
            dimension_semantics=("parallel", "arbitrary")),
    )(adj_p, x_p)


def _aggregate_transform(adj_p, h_p, w_p, *, apply_relu, out_dtype, tm, tk):
    n_pad = adj_p.shape[0]
    d_in_p, d_out_p = w_p.shape
    kernel = functools.partial(_agg_w_kernel, apply_relu=apply_relu)
    return pl.pallas_call(
        kernel,
        out_shape=jax.ShapeDtypeStruct((n_pad, d_out_p), out_dtype),
        grid=(n_pad // tm, n_pad // tk),
        in_specs=[pl.BlockSpec((tm, tk), lambda i, k: (i, k)),
                  pl.BlockSpec((tk, d_in_p), lambda i, k: (k, 0)),
                  pl.BlockSpec((d_in_p, d_out_p), lambda i, k: (0, 0))],
        out_specs=pl.BlockSpec((tm, d_out_p), lambda i, k: (i, 0)),
        scratch_shapes=[pltpu.VMEM((tm, d_in_p), jnp.float32)],
        compiler_params=pltpu.CompilerParams(
            dimension_semantics=("parallel", "arbitrary")),
    )(adj_p, h_p, w_p)


def _gcn_layer_tiled(adj_p, h_p, w_p, *, apply_relu, out_dtype, tm, tk):
    d_in_p, d_out_p = w_p.shape
    if d_out_p < d_in_p:
        # Transform-then-aggregate: stream the narrower features through adj.
        t = _rows_matmul(h_p, w_p, out_dtype=adj_p.dtype, tm=tm)
        return _aggregate(adj_p, t, apply_relu=apply_relu,
                          out_dtype=out_dtype, tm=tm, tk=tk)
    return _aggregate_transform(adj_p, h_p, w_p, apply_relu=apply_relu,
                                out_dtype=out_dtype, tm=tm, tk=tk)


def _choose_tiles(n, d_max_pad, itemsize):
    """(tm, tk, n_pad) for the tiled path.

    Big streamed tk (long adj DMAs, few grid steps), row tiles preferring
    >=4 tiles (balanced across both v7x TensorCores, invisible elsewhere),
    and tile working set kept inside every generation's default scoped VMEM.
    N is padded up to a multiple of the chosen tk (capped at ~12.5% padding).
    """
    n128 = _round_up(n, _LANE)
    vmem_cap = 12 * 1024 * 1024
    for tk in (2048, 1024, 512, 256, 128):
        n_pad = _round_up(n, tk)
        if tk != 128 and n_pad * 8 > n128 * 9:   # >12.5% row padding: not worth it
            continue
        tms = [t for t in (512, 256, 128) if n_pad % t == 0]
        tms.sort(key=lambda t: (-min(n_pad // t, 4), -t))
        for tm in tms:
            # double-buffered adj + activation tiles, f32 accumulator/output
            est = (2 * (tm * tk + tk * d_max_pad) * itemsize
                   + 4 * tm * d_max_pad * 4)
            if est <= vmem_cap:
                return tm, tk, n_pad
    return 128, 128, n128


# ---------------------------------------------------------------------------
# Wrapper: padding / layout plumbing hoisted out of the per-call forward.
# ---------------------------------------------------------------------------
class GCNBaselinePallas:
    """Pallas forward for net_gcn_baseline (eval / val_test=True path).

    adj: (N, N) dense; weights[l]: (D_{l+1}, D_l) like torch.nn.Linear
    (bias=False).  Padding, weight transpose and dtype casts of adj/weights
    happen ONCE here; __call__ only pads/casts x and launches the kernels.
    """

    def __init__(self, adj, weights, *, input_dtype=None, force_tiled=False):
        n = int(adj.shape[0])
        dims = [int(weights[0].shape[1])] + [int(w.shape[0]) for w in weights]
        dims_pad = [_round_up(d, _LANE) for d in dims]
        n128 = _round_up(n, _LANE)
        budget, vmem_limit = _fused_vmem_budget()

        # Path + compute-dtype resolution.
        if force_tiled:
            fused = False
            cdt = jnp.dtype(input_dtype if input_dtype is not None else jnp.bfloat16)
        elif input_dtype is not None:
            cdt = jnp.dtype(input_dtype)
            fused = _fused_vmem_need(n128, dims_pad, cdt.itemsize) <= budget
        else:
            if _fused_vmem_need(n128, dims_pad, 4) <= budget:
                fused, cdt = True, jnp.dtype(jnp.float32)
            elif _fused_vmem_need(n128, dims_pad, 2) <= budget:
                fused, cdt = True, jnp.dtype(jnp.bfloat16)
            else:
                fused, cdt = False, jnp.dtype(jnp.bfloat16)   # tiled path: bf16 streaming

        if fused:
            n_pad, tm, tk = n128, None, None
        else:
            tm, tk, n_pad = _choose_tiles(n, max(dims_pad), cdt.itemsize)

        # Lane-dense zero padding; weights transposed to (d_in_pad, d_out_pad).
        adj_p = jnp.pad(jnp.asarray(adj, jnp.float32),
                        ((0, n_pad - n), (0, n_pad - n))).astype(cdt)
        ws_p = tuple(
            jnp.pad(jnp.asarray(w, jnp.float32).T,
                    ((0, dims_pad[ln] - dims[ln]),
                     (0, dims_pad[ln + 1] - dims[ln + 1]))).astype(cdt)
            for ln, w in enumerate(weights))

        self.n, self.dims, self.dims_pad, self.n_pad = n, dims, dims_pad, n_pad
        self.cdt, self.fused, self.tm, self.tk = cdt, fused, tm, tk
        self.vmem_limit = vmem_limit
        self.adj_p, self.ws_p = adj_p, ws_p
        self._fwd = jax.jit(self._forward_padded)

    def _forward_padded(self, x_p, adj_p, ws_p):
        if self.fused:
            return _fused_forward(adj_p, x_p, ws_p, self.vmem_limit)
        h = x_p
        num_layers = len(ws_p)
        for ln, w in enumerate(ws_p):
            last = ln == num_layers - 1
            h = _gcn_layer_tiled(
                adj_p, h, w, apply_relu=not last,
                out_dtype=jnp.float32 if last else self.cdt,
                tm=self.tm, tk=self.tk)
        return h

    def __call__(self, x, val_test=True):
        if not val_test:
            # TODO(synk): training-path dropout (p=0.5) via pltpu.prng_random_bits.
            raise NotImplementedError(
                "Only the eval / val_test=True path is implemented (no dropout).")
        n, d0 = x.shape
        assert n == self.n and d0 == self.dims[0], "input shape mismatch"
        x_p = jnp.pad(jnp.asarray(x, jnp.float32),
                      ((0, self.n_pad - n), (0, self.dims_pad[0] - d0))).astype(self.cdt)
        out_p = self._fwd(x_p, self.adj_p, self.ws_p)
        return out_p[:n, :self.dims[-1]]


def net_gcn_baseline_forward(x, adj, weights, val_test=True, *,
                             input_dtype=None, force_tiled=False):
    """One-shot functional wrapper (re-pads adj/weights every call; prefer
    GCNBaselinePallas to amortize that over repeated forwards)."""
    model = GCNBaselinePallas(adj, weights, input_dtype=input_dtype,
                              force_tiled=force_tiled)
    return model(x, val_test=val_test)


def init_weights(key, embedding_dim):
    """Deterministic nn.Linear-style weights, shape (out_features, in_features)."""
    weights = []
    for ln in range(len(embedding_dim) - 1):
        key, sub = jax.random.split(key)
        fan_in = embedding_dim[ln]
        bound = 1.0 / jnp.sqrt(float(fan_in))
        w = jax.random.uniform(
            sub, (embedding_dim[ln + 1], embedding_dim[ln]),
            dtype=jnp.float32, minval=-bound, maxval=bound)
        weights.append(w)
    return weights


if __name__ == "__main__":
    key = jax.random.PRNGKey(0)

    # Small GCN: 256 nodes, embedding dims [32, 64, 16] -> 2 layers.
    N = 256
    embedding_dim = [32, 64, 16]

    key, kx, kadj, kw = jax.random.split(key, 4)
    x = jax.random.normal(kx, (N, embedding_dim[0]), dtype=jnp.float32)

    # Symmetric, row-normalized dense adjacency (deterministic).
    a = jax.random.uniform(kadj, (N, N), dtype=jnp.float32)
    a = (a + a.T) * 0.5 + jnp.eye(N, dtype=jnp.float32)
    adj = a / jnp.sum(a, axis=1, keepdims=True)

    weights = init_weights(kw, embedding_dim)

    def reference(x, adj, weights):
        h = x
        for ln, w in enumerate(weights):
            h = adj @ h
            h = h @ w.T
            if ln != len(weights) - 1:
                h = jnp.maximum(h, 0.0)
        return h

    ref = reference(x, adj, weights)

    # 1) fused, single-buffered VMEM-resident kernel (auto-selected), f32.
    out = net_gcn_baseline_forward(x, adj, weights)
    out = jax.block_until_ready(out)
    assert out.shape == (N, embedding_dim[-1])
    assert jnp.allclose(out, ref, atol=5e-3, rtol=5e-3), "fused f32 mismatch"

    # 2) tiled per-layer fallback, forced, f32.
    out_t = net_gcn_baseline_forward(x, adj, weights, force_tiled=True,
                                     input_dtype=jnp.float32)
    out_t = jax.block_until_ready(out_t)
    assert jnp.allclose(out_t, ref, atol=5e-3, rtol=5e-3), "tiled f32 mismatch"

    # 3) tiled fallback with its default bf16 streaming dtype (f32 accumulate).
    out_tb = net_gcn_baseline_forward(x, adj, weights, force_tiled=True)
    out_tb = jax.block_until_ready(out_tb)
    assert jnp.allclose(out_tb, ref, atol=5e-2, rtol=5e-2), "tiled bf16 mismatch"

    # 4) fused with bf16 MXU inputs (VMEM-size saver), f32 accumulation.
    out_b = net_gcn_baseline_forward(x, adj, weights, input_dtype=jnp.bfloat16)
    out_b = jax.block_until_ready(out_b)
    assert jnp.allclose(out_b, ref, atol=5e-2, rtol=5e-2), "fused bf16 mismatch"

    # 5) narrow output layer exercises transform-then-aggregate + the cached
    #    class API (adj/weight padding hoisted out of the per-call forward).
    embedding_dim2 = [192, 384, 16]
    key, kx2, kw2 = jax.random.split(key, 3)
    x2 = jax.random.normal(kx2, (N, embedding_dim2[0]), dtype=jnp.float32)
    weights2 = init_weights(kw2, embedding_dim2)
    ref2 = reference(x2, adj, weights2)
    model2 = GCNBaselinePallas(adj, weights2, input_dtype=jnp.float32,
                               force_tiled=True)
    out2 = jax.block_until_ready(model2(x2))
    assert jnp.allclose(out2, ref2, atol=5e-3, rtol=5e-3), "narrow-output tiled mismatch"
    out2b = jax.block_until_ready(model2(x2))          # cached adj/weights reused
    assert jnp.allclose(out2b, out2), "cached forward mismatch"

    print("KERNEL_OK")
</pallas_src>

<mosaic_0001>
module attributes {stable_mosaic.version = 11 : i64} {
  func.func @_fused_gcn_kernel(%arg0: memref<256x256xf32, #tpu.memory_space<vmem>>, %arg1: memref<256x128xf32, #tpu.memory_space<vmem>>, %arg2: memref<128x128xf32, #tpu.memory_space<vmem>>, %arg3: memref<128x128xf32, #tpu.memory_space<vmem>>, %arg4: memref<256x128xf32, #tpu.memory_space<vmem>>) attributes {dimension_semantics = [], scalar_prefetch = 0 : i64, scratch_operands = 0 : i64, tpu.core_type = #tpu.core_type<tc>} {
    %c0 = arith.constant 0 : index
    %c0_0 = arith.constant 0 : index
    %0 = vector.load %arg0[%c0, %c0_0] : memref<256x256xf32, #tpu.memory_space<vmem>>, vector<256x256xf32>
    %c0_1 = arith.constant 0 : index
    %c0_2 = arith.constant 0 : index
    %1 = vector.load %arg1[%c0_1, %c0_2] : memref<256x128xf32, #tpu.memory_space<vmem>>, vector<256x128xf32>
    %c0_3 = arith.constant 0 : index
    %c0_4 = arith.constant 0 : index
    %2 = vector.load %arg2[%c0_3, %c0_4] : memref<128x128xf32, #tpu.memory_space<vmem>>, vector<128x128xf32>
    %cst = arith.constant dense<0.000000e+00> : vector<256x128xf32>
    %3 = tpu.matmul %0, %1, %cst {dimension_numbers = #tpu.dot_dimension_numbers<[1], [0], [0], [1], [0, 0, 1, 1], [], []>} : vector<256x256xf32>, vector<256x128xf32>, vector<256x128xf32> -> vector<256x128xf32>
    %cst_5 = arith.constant dense<0.000000e+00> : vector<256x128xf32>
    %4 = tpu.matmul %3, %2, %cst_5 {dimension_numbers = #tpu.dot_dimension_numbers<[1], [0], [0], [1], [0, 0, 1, 1], [], []>} : vector<256x128xf32>, vector<128x128xf32>, vector<256x128xf32> -> vector<256x128xf32>
    %cst_6 = arith.constant 0.000000e+00 : f32
    %5 = vector.broadcast %cst_6 : f32 to vector<256x128xf32>
    %6 = arith.maximumf %4, %5 : vector<256x128xf32>
    %c0_7 = arith.constant 0 : index
    %c0_8 = arith.constant 0 : index
    %7 = vector.load %arg3[%c0_7, %c0_8] : memref<128x128xf32, #tpu.memory_space<vmem>>, vector<128x128xf32>
    %cst_9 = arith.constant dense<0.000000e+00> : vector<256x128xf32>
    %8 = tpu.matmul %0, %6, %cst_9 {dimension_numbers = #tpu.dot_dimension_numbers<[1], [0], [0], [1], [0, 0, 1, 1], [], []>} : vector<256x256xf32>, vector<256x128xf32>, vector<256x128xf32> -> vector<256x128xf32>
    %cst_10 = arith.constant dense<0.000000e+00> : vector<256x128xf32>
    %9 = tpu.matmul %8, %7, %cst_10 {dimension_numbers = #tpu.dot_dimension_numbers<[1], [0], [0], [1], [0, 0, 1, 1], [], []>} : vector<256x128xf32>, vector<128x128xf32>, vector<256x128xf32> -> vector<256x128xf32>
    %c0_11 = arith.constant 0 : index
    %c0_12 = arith.constant 0 : index
    %10 = vector.load %arg4[%c0_11, %c0_12] : memref<256x128xf32, #tpu.memory_space<vmem>>, vector<256x128xf32>
    tpu.vector_store %arg4[%c0_11, %c0_12], %9 {strides = array<i32>} : memref<256x128xf32, #tpu.memory_space<vmem>>, vector<256x128xf32>,
    return
  }
}

</mosaic_0001>

<llo_original>
// kernel: _forward_padded.1
$region0: #{_forward_padded.1}
  #allocation0 [shape = 'u32[]', space=smem, size = 0x4, offset = 0x4, fixed_abs, tag = 'smem constant byte address 0x4 - core index']
  #allocation1 [shape = 'u32[144,128]{1,0:T(1,128)}', space=vmem, size = 0x12000, scoped, tag = 'internal scratch']
  %s0 = inlined_call_operand.hbm [shape: f32[256,256], index: 0, kind: input, shape index: {}]
  %s1 = inlined_call_operand.hbm [shape: f32[256,128], index: 1, kind: input, shape index: {}]
  %s2 = inlined_call_operand.hbm [shape: f32[128,128], index: 2, kind: input, shape index: {}]
  %s3 = inlined_call_operand.hbm [shape: f32[128,128], index: 3, kind: input, shape index: {}]
  %s4 = inlined_call_operand.hbm [shape: f32[256,128], index: 4, kind: output, shape index: {}]
  %s5 = sld [smem:[#allocation0]]
  $region42: #{_forward_padded.1} parent=0
    _
  %s7 = ssub.s32 1, %s5
  %s8 = scalar_select 0, %s7, %s5
  $region1: #{_forward_padded.1} parent=0
    #allocation2 [shape = 'u8[262144]{0}', space=vmem, size = 0x40000, scoped, tag = 'input window, operand 0, single buffered']
    #allocation3 [shape = 's32[1]{0}', space=sflag, size = 0x4, scoped, tag = 'scoped memory for _forward_padded.1']
    #allocation4 [shape = 's32[1]{0}', space=sflag, size = 0x4, scoped, tag = 'scoped memory for _forward_padded.1']
    #allocation5 [shape = 'u8[131072]{0}', space=vmem, size = 0x20000, scoped, tag = 'input window, operand 1, single buffered']
    #allocation6 [shape = 's32[1]{0}', space=sflag, size = 0x4, scoped, tag = 'scoped memory for _forward_padded.1']
    #allocation7 [shape = 'u8[65536]{0}', space=vmem, size = 0x10000, scoped, tag = 'input window, operand 2, single buffered']
    #allocation8 [shape = 'u8[65536]{0}', space=vmem, size = 0x10000, scoped, tag = 'input window, operand 3, single buffered']
    #allocation9 [shape = 's32[1]{0}', space=sflag, size = 0x4, scoped, tag = 'scoped memory for _forward_padded.1']
    #allocation10 [shape = 'u8[131072]{0}', space=vmem, size = 0x20000, scoped, tag = 'output window, operand 0, single buffered']
    %9 = vsyncpa [#allocation3], 0
    %10 = vsyncpa [#allocation6], 0
    %11 = vsyncpa [#allocation9], 0
    %12 = vsyncpa [#allocation4], 0
    // Predicated region
    $region2: #{_forward_padded.1} parent=1 // pred_check
      _
    $region3: #{_forward_padded.1} parent=1 // pred_check_branch
      %14 = sbr.rel (0) target = $region5
    $region4: #{_forward_padded.1} parent=1 // pred_region
      %s16 = ssub.s32 8192, 8192
      %17 = vsyncadd [#allocation3], %s16
      %s18 = sshll.u32 [#allocation2], 4
      %s19 = int_to_ptr.vmem [resolvable:$true] %s18
      %24 = dma.hbm_to_vmem [thread:$0]  %s0, 8192, %s19, [#allocation3], 256, 256, 16
    $region5: #{_forward_padded.1} parent=1 // pred_fallthru
      _
    // Predicated region
    $region6: #{_forward_padded.1} parent=1 // pred_check
      _
    $region7: #{_forward_padded.1} parent=1 // pred_check_branch
      %26 = sbr.rel (0) target = $region9
    $region8: #{_forward_padded.1} parent=1 // pred_region
      %s28 = ssub.s32 4096, 4096
      %29 = vsyncadd [#allocation6], %s28
      %s30 = sshll.u32 [#allocation5], 4
      %s31 = int_to_ptr.vmem [resolvable:$true] %s30
      %36 = dma.hbm_to_vmem [thread:$0]  %s1, 4096, %s31, [#allocation6], 128, 128, 8
    $region9: #{_forward_padded.1} parent=1 // pred_fallthru
      _
    // Predicated region
    $region10: #{_forward_padded.1} parent=1 // pred_check
      _
    $region11: #{_forward_padded.1} parent=1 // pred_check_branch
      %38 = sbr.rel (0) target = $region13
    $region12: #{_forward_padded.1} parent=1 // pred_region
      %s40 = ssub.s32 2048, 2048
      %41 = vsyncadd [#allocation6], %s40
      %s42 = sshll.u32 [#allocation7], 4
      %s43 = int_to_ptr.vmem [resolvable:$true] %s42
      %48 = dma.hbm_to_vmem [thread:$0]  %s2, 2048, %s43, [#allocation6], 128, 128, 8
    $region13: #{_forward_padded.1} parent=1 // pred_fallthru
      _
    // Predicated region
    $region14: #{_forward_padded.1} parent=1 // pred_check
      _
    $region15: #{_forward_padded.1} parent=1 // pred_check_branch
      %50 = sbr.rel (0) target = $region17
    $region16: #{_forward_padded.1} parent=1 // pred_region
      %s52 = ssub.s32 2048, 2048
      %53 = vsyncadd [#allocation9], %s52
      %s54 = sshll.u32 [#allocation8], 4
      %s55 = int_to_ptr.vmem [resolvable:$true] %s54
      %60 = dma.hbm_to_vmem [thread:$0]  %s3, 2048, %s55, [#allocation9], 128, 128, 8
    $region17: #{_forward_padded.1} parent=1 // pred_fallthru
      _
    // Predicated region
    $region18: #{_forward_padded.1} parent=1 // pred_check
      _
    $region19: #{_forward_padded.1} parent=1 // pred_check_branch
      %62 = sbr.rel (0) target = $region21
    $region20: #{_forward_padded.1} parent=1 // pred_region
      %63 = dma.done [#allocation3], 8192
    $region21: #{_forward_padded.1} parent=1 // pred_fallthru
      _
    // Predicated region
    $region22: #{_forward_padded.1} parent=1 // pred_check
      _
    $region23: #{_forward_padded.1} parent=1 // pred_check_branch
      %65 = sbr.rel (0) target = $region25
    $region24: #{_forward_padded.1} parent=1 // pred_region
      %66 = dma.done [#allocation6], 4096
    $region25: #{_forward_padded.1} parent=1 // pred_fallthru
      _
    // Predicated region
    $region26: #{_forward_padded.1} parent=1 // pred_check
      _
    $region27: #{_forward_padded.1} parent=1 // pred_check_branch
      %68 = sbr.rel (0) target = $region29
    $region28: #{_forward_padded.1} parent=1 // pred_region
      %69 = dma.done [#allocation6], 2048
    $region29: #{_forward_padded.1} parent=1 // pred_fallthru
      _
    // Predicated region
    $region30: #{_forward_padded.1} parent=1 // pred_check
      _
    $region31: #{_forward_padded.1} parent=1 // pred_check_branch
      %71 = sbr.rel (0) target = $region33
    $region32: #{_forward_padded.1} parent=1 // pred_region
      %72 = dma.done [#allocation9], 2048
    $region33: #{_forward_padded.1} parent=1 // pred_fallthru
      _
    %v73 = vld [vmem:[#allocation2] sm:$0xff]
    %v74 = vld [vmem:[#allocation2 + $0x8] sm:$0xff]
    %v75 = vld [vmem:[#allocation2 + $0x10] sm:$0xff]
    %v76 = vld [vmem:[#allocation2 + $0x18] sm:$0xff]
    %v77 = vld [vmem:[#allocation2 + $0x20] sm:$0xff]
    %v78 = vld [vmem:[#allocation2 + $0x28] sm:$0xff]
    %v79 = vld [vmem:[#allocation2 + $0x30] sm:$0xff]
    %v80 = vld [vmem:[#allocation2 + $0x38] sm:$0xff]
    %v81 = vld [vmem:[#allocation2 + $0x40] sm:$0xff]
    %v82 = vld [vmem:[#allocation2 + $0x48] sm:$0xff]
    %v83 = vld [vmem:[#allocation2 + $0x50] sm:$0xff]
    %v84 = vld [vmem:[#allocation2 + $0x58] sm:$0xff]
    %v85 = vld [vmem:[#allocation2 + $0x60] sm:$0xff]
    %v86 = vld [vmem:[#allocation2 + $0x68] sm:$0xff]
    %v87 = vld [vmem:[#allocation2 + $0x70] sm:$0xff]
    %v88 = vld [vmem:[#allocation2 + $0x78] sm:$0xff]
    %v89 = vld [vmem:[#allocation2 + $0x80] sm:$0xff]
    %v90 = vld [vmem:[#allocation2 + $0x88] sm:$0xff]
    %v91 = vld [vmem:[#allocation2 + $0x90] sm:$0xff]
    %v92 = vld [vmem:[#allocation2 + $0x98] sm:$0xff]
    %v93 = vld [vmem:[#allocation2 + $0xa0] sm:$0xff]
    %v94 = vld [vmem:[#allocation2 + $0xa8] sm:$0xff]
    %v95 = vld [vmem:[#allocation2 + $0xb0] sm:$0xff]
    %v96 = vld [vmem:[#allocation2 + $0xb8] sm:$0xff]
    %v97 = vld [vmem:[#allocation2 + $0xc0] sm:$0xff]
    %v98 = vld [vmem:[#allocation2 + $0xc8] sm:$0xff]
    %v99 = vld [vmem:[#allocation2 + $0xd0] sm:$0xff]
    %v100 = vld [vmem:[#allocation2 + $0xd8] sm:$0xff]
    %v101 = vld [vmem:[#allocation2 + $0xe0] sm:$0xff]
    %v102 = vld [vmem:[#allocation2 + $0xe8] sm:$0xff]
    %v103 = vld [vmem:[#allocation2 + $0xf0] sm:$0xff]
    %v104 = vld [vmem:[#allocation2 + $0xf8] sm:$0xff]
    %v105 = vld [vmem:[#allocation2 + $0x100] sm:$0xff]
    %v106 = vld [vmem:[#allocation2 + $0x108] sm:$0xff]
    %v107 = vld [vmem:[#allocation2 + $0x110] sm:$0xff]
    %v108 = vld [vmem:[#allocation2 + $0x118] sm:$0xff]
    %v109 = vld [vmem:[#allocation2 + $0x120] sm:$0xff]
    %v110 = vld [vmem:[#allocation2 + $0x128] sm:$0xff]
    %v111 = vld [vmem:[#allocation2 + $0x130] sm:$0xff]
    %v112 = vld [vmem:[#allocation2 + $0x138] sm:$0xff]
    %v113 = vld [vmem:[#allocation2 + $0x140] sm:$0xff]
    %v114 = vld [vmem:[#allocation2 + $0x148] sm:$0xff]
    %v115 = vld [vmem:[#allocation2 + $0x150] sm:$0xff]
    %v116 = vld [vmem:[#allocation2 + $0x158] sm:$0xff]
    %v117 = vld [vmem:[#allocation2 + $0x160] sm:$0xff]
    %v118 = vld [vmem:[#allocation2 + $0x168] sm:$0xff]
    %v119 = vld [vmem:[#allocation2 + $0x170] sm:$0xff]
    %v120 = vld [vmem:[#allocation2 + $0x178] sm:$0xff]
    %v121 = vld [vmem:[#allocation2 + $0x180] sm:$0xff]
    %v122 = vld [vmem:[#allocation2 + $0x188] sm:$0xff]
    %v123 = vld [vmem:[#allocation2 + $0x190] sm:$0xff]
    %v124 = vld [vmem:[#allocation2 + $0x198] sm:$0xff]
    %v125 = vld [vmem:[#allocation2 + $0x1a0] sm:$0xff]
    %v126 = vld [vmem:[#allocation2 + $0x1a8] sm:$0xff]
    %v127 = vld [vmem:[#allocation2 + $0x1b0] sm:$0xff]
    %v128 = vld [vmem:[#allocation2 + $0x1b8] sm:$0xff]
    %v129 = vld [vmem:[#allocation2 + $0x1c0] sm:$0xff]
    %v130 = vld [vmem:[#allocation2 + $0x1c8] sm:$0xff]
    %v131 = vld [vmem:[#allocation2 + $0x1d0] sm:$0xff]
    %v132 = vld [vmem:[#allocation2 + $0x1d8] sm:$0xff]
    %v133 = vld [vmem:[#allocation2 + $0x1e0] sm:$0xff]
    %v134 = vld [vmem:[#allocation2 + $0x1e8] sm:$0xff]
    %v135 = vld [vmem:[#allocation2 + $0x1f0] sm:$0xff]
    %v136 = vld [vmem:[#allocation2 + $0x1f8] sm:$0xff]
    %v137 = vld [vmem:[#allocation5] sm:$0xff]
    %v138 = vld [vmem:[#allocation5 + $0x8] sm:$0xff]
    %v139 = vld [vmem:[#allocation5 + $0x10] sm:$0xff]
    %v140 = vld [vmem:[#allocation5 + $0x18] sm:$0xff]
    %v141 = vld [vmem:[#allocation5 + $0x20] sm:$0xff]
    %v142 = vld [vmem:[#allocation5 + $0x28] sm:$0xff]
    %v143 = vld [vmem:[#allocation5 + $0x30] sm:$0xff]
    %v144 = vld [vmem:[#allocation5 + $0x38] sm:$0xff]
    %v145 = vld [vmem:[#allocation5 + $0x40] sm:$0xff]
    %v146 = vld [vmem:[#allocation5 + $0x48] sm:$0xff]
    %v147 = vld [vmem:[#allocation5 + $0x50] sm:$0xff]
    %v148 = vld [vmem:[#allocation5 + $0x58] sm:$0xff]
    %v149 = vld [vmem:[#allocation5 + $0x60] sm:$0xff]
    %v150 = vld [vmem:[#allocation5 + $0x68] sm:$0xff]
    %v151 = vld [vmem:[#allocation5 + $0x70] sm:$0xff]
    %v152 = vld [vmem:[#allocation5 + $0x78] sm:$0xff]
    %v153 = vld [vmem:[#allocation5 + $0x80] sm:$0xff]
    %v154 = vld [vmem:[#allocation5 + $0x88] sm:$0xff]
    %v155 = vld [vmem:[#allocation5 + $0x90] sm:$0xff]
    %v156 = vld [vmem:[#allocation5 + $0x98] sm:$0xff]
    %v157 = vld [vmem:[#allocation5 + $0xa0] sm:$0xff]
    %v158 = vld [vmem:[#allocation5 + $0xa8] sm:$0xff]
    %v159 = vld [vmem:[#allocation5 + $0xb0] sm:$0xff]
    %v160 = vld [vmem:[#allocation5 + $0xb8] sm:$0xff]
    %v161 = vld [vmem:[#allocation5 + $0xc0] sm:$0xff]
    %v162 = vld [vmem:[#allocation5 + $0xc8] sm:$0xff]
    %v163 = vld [vmem:[#allocation5 + $0xd0] sm:$0xff]
    %v164 = vld [vmem:[#allocation5 + $0xd8] sm:$0xff]
    %v165 = vld [vmem:[#allocation5 + $0xe0] sm:$0xff]
    %v166 = vld [vmem:[#allocation5 + $0xe8] sm:$0xff]
    %v167 = vld [vmem:[#allocation5 + $0xf0] sm:$0xff]
    %v168 = vld [vmem:[#allocation5 + $0xf8] sm:$0xff]
    %v169 = vld [vmem:[#allocation7] sm:$0xff]
    %v170 = vld [vmem:[#allocation7 + $0x8] sm:$0xff]
    %v171 = vld [vmem:[#allocation7 + $0x10] sm:$0xff]
    %v172 = vld [vmem:[#allocation7 + $0x18] sm:$0xff]
    %v173 = vld [vmem:[#allocation7 + $0x20] sm:$0xff]
    %v174 = vld [vmem:[#allocation7 + $0x28] sm:$0xff]
    %v175 = vld [vmem:[#allocation7 + $0x30] sm:$0xff]
    %v176 = vld [vmem:[#allocation7 + $0x38] sm:$0xff]
    %v177 = vld [vmem:[#allocation7 + $0x40] sm:$0xff]
    %v178 = vld [vmem:[#allocation7 + $0x48] sm:$0xff]
    %v179 = vld [vmem:[#allocation7 + $0x50] sm:$0xff]
    %v180 = vld [vmem:[#allocation7 + $0x58] sm:$0xff]
    %v181 = vld [vmem:[#allocation7 + $0x60] sm:$0xff]
    %v182 = vld [vmem:[#allocation7 + $0x68] sm:$0xff]
    %v183 = vld [vmem:[#allocation7 + $0x70] sm:$0xff]
    %v184 = vld [vmem:[#allocation7 + $0x78] sm:$0xff]
    %185 = vmatprep.subr.mxu0 0.0
    %186 = vmatpush1.msra.mxu0 %v137
    %187 = vmatprep.subr.mxu0 0.0
    %188 = vmatpush1.msra.mxu0 %v138
    %189 = vmatprep.subr.mxu0 0.0
    %190 = vmatpush1.msra.mxu0 %v139
    %191 = vmatprep.subr.mxu0 0.0
    %192 = vmatpush1.msra.mxu0 %v140
    %193 = vmatprep.subr.mxu0 0.0
    %194 = vmatpush1.msra.mxu0 %v141
    %195 = vmatprep.subr.mxu0 0.0
    %196 = vmatpush1.msra.mxu0 %v142
    %197 = vmatprep.subr.mxu0 0.0
    %198 = vmatpush1.msra.mxu0 %v143
    %199 = vmatprep.subr.mxu0 0.0
    %200 = vmatpush1.msra.mxu0 %v144
    %201 = vmatprep.subr.mxu0 0.0
    %202 = vmatpush1.msra.mxu0 %v145
    %203 = vmatprep.subr.mxu0 0.0
    %204 = vmatpush1.msra.mxu0 %v146
    %205 = vmatprep.subr.mxu0 0.0
    %206 = vmatpush1.msra.mxu0 %v147
    %207 = vmatprep.subr.mxu0 0.0
    %208 = vmatpush1.msra.mxu0 %v148
    %209 = vmatprep.subr.mxu0 0.0
    %210 = vmatpush1.msra.mxu0 %v149
    %211 = vmatprep.subr.mxu0 0.0
    %212 = vmatpush1.msra.mxu0 %v150
    %213 = vmatprep.subr.mxu0 0.0
    %214 = vmatpush1.msra.mxu0 %v151
    %215 = vmatprep.subr.mxu0 0.0
    %216 = vmatpush1.msra.mxu0 %v152
    %217 = vmatprep.subr.mxu0 0.0
    %218 = vmatpush1.msra.mxu0 %v153
    %219 = vmatprep.subr.mxu0 0.0
    %220 = vmatpush1.msra.mxu0 %v154
    %221 = vmatprep.subr.mxu0 0.0
    %222 = vmatpush1.msra.mxu0 %v155
    %223 = vmatprep.subr.mxu0 0.0
    %224 = vmatpush1.msra.mxu0 %v156
    %225 = vmatprep.subr.mxu0 0.0
    %226 = vmatpush1.msra.mxu0 %v157
    %227 = vmatprep.subr.mxu0 0.0
    %228 = vmatpush1.msra.mxu0 %v158
    %229 = vmatprep.subr.mxu0 0.0
    %230 = vmatpush1.msra.mxu0 %v159
    %231 = vmatprep.subr.mxu0 0.0
    %232 = vmatpush1.msra.mxu0 %v160
    %233 = vmatprep.subr.mxu0 0.0
    %234 = vmatpush1.msra.mxu0 %v161
    %235 = vmatprep.subr.mxu0 0.0
    %236 = vmatpush1.msra.mxu0 %v162
    %237 = vmatprep.subr.mxu0 0.0
    %238 = vmatpush1.msra.mxu0 %v163
    %239 = vmatprep.subr.mxu0 0.0
    %240 = vmatpush1.msra.mxu0 %v164
    %241 = vmatprep.subr.mxu0 0.0
    %242 = vmatpush1.msra.mxu0 %v165
    %243 = vmatprep.subr.mxu0 0.0
    %244 = vmatpush1.msra.mxu0 %v166
    %245 = vmatprep.subr.mxu0 0.0
    %246 = vmatpush1.msra.mxu0 %v167
    %247 = vmatprep.subr.mxu0 0.0
    %248 = vmatpush1.msra.mxu0 %v168
    %249 = vmatprep.mubr.f32.mxu0 %v74
    %250 = vmatmul.mubr.f32.gmra.mrb[0].mxu0 %v73
    %v251 = vpop.f32.mrb[0].mxu0
    %v252 = vadd.f32 0.0, %v251
    %v253 = vpop.f32.mrb[0].mxu0
    %254 = vmatprep.mubr.f32.mxu0 %v76
    %255 = vmatmul.mubr.f32.gmra.mrb[0].mxu0 %v75
    %v256 = vpop.f32.mrb[0].mxu0
    %v257 = vadd.f32 0.0, %v256
    %v258 = vpop.f32.mrb[0].mxu0
    %259 = vmatprep.mubr.f32.mxu0 %v78
    %260 = vmatmul.mubr.f32.gmra.mrb[0].mxu0 %v77
    %v261 = vpop.f32.mrb[0].mxu0
    %v262 = vadd.f32 0.0, %v261
    %v263 = vpop.f32.mrb[0].mxu0
    %264 = vmatprep.mubr.f32.mxu0 %v80
    %265 = vmatmul.mubr.f32.gmra.mrb[0].mxu0 %v79
    %v266 = vpop.f32.mrb[0].mxu0
    %v267 = vadd.f32 0.0, %v266
    %v268 = vpop.f32.mrb[0].mxu0
    %269 = vmatprep.mubr.f32.mxu0 %v82
    %270 = vmatmul.mubr.f32.gmra.mrb[0].mxu0 %v81
    %v271 = vpop.f32.mrb[0].mxu0
    %v272 = vadd.f32 0.0, %v271
    %v273 = vpop.f32.mrb[0].mxu0
    %274 = vmatprep.mubr.f32.mxu0 %v84
    %275 = vmatmul.mubr.f32.gmra.mrb[0].mxu0 %v83
    %v276 = vpop.f32.mrb[0].mxu0
    %v277 = vadd.f32 0.0, %v276
    %v278 = vpop.f32.mrb[0].mxu0
    %279 = vmatprep.mubr.f32.mxu0 %v86
    %280 = vmatmul.mubr.f32.gmra.mrb[0].mxu0 %v85
    %v281 = vpop.f32.mrb[0].mxu0
    %v282 = vadd.f32 0.0, %v281
    %v283 = vpop.f32.mrb[0].mxu0
    %284 = vmatprep.mubr.f32.mxu0 %v88
    %285 = vmatmul.mubr.f32.gmra.mrb[0].mxu0 %v87
    %v286 = vpop.f32.mrb[0].mxu0
    %v287 = vadd.f32 0.0, %v286
    %v288 = vpop.f32.mrb[0].mxu0
    %289 = vmatprep.mubr.f32.mxu0 %v90
    %290 = vmatmul.mubr.f32.gmra.mrb[0].mxu0 %v89
    %v291 = vpop.f32.mrb[0].mxu0
    %v292 = vadd.f32 0.0, %v291
    %v293 = vpop.f32.mrb[0].mxu0
    %294 = vmatprep.mubr.f32.mxu0 %v92
    %295 = vmatmul.mubr.f32.gmra.mrb[0].mxu0 %v91
    %v296 = vpop.f32.mrb[0].mxu0
    %v297 = vadd.f32 0.0, %v296
    %v298 = vpop.f32.mrb[0].mxu0
    %299 = vmatprep.mubr.f32.mxu0 %v94
    %300 = vmatmul.mubr.f32.gmra.mrb[0].mxu0 %v93
    %v301 = vpop.f32.mrb[0].mxu0
    %v302 = vadd.f32 0.0, %v301
    %v303 = vpop.f32.mrb[0].mxu0
    %304 = vmatprep.mubr.f32.mxu0 %v96
    %305 = vmatmul.mubr.f32.gmra.mrb[0].mxu0 %v95
    %v306 = vpop.f32.mrb[0].mxu0
    %v307 = vadd.f32 0.0, %v306
    %v308 = vpop.f32.mrb[0].mxu0
    %309 = vmatprep.mubr.f32.mxu0 %v98
    %310 = vmatmul.mubr.f32.gmra.mrb[0].mxu0 %v97
    %v311 = vpop.f32.mrb[0].mxu0
    %v312 = vadd.f32 0.0, %v311
    %v313 = vpop.f32.mrb[0].mxu0
    %314 = vmatprep.mubr.f32.mxu0 %v100
    %315 = vmatmul.mubr.f32.gmra.mrb[0].mxu0 %v99
    %v316 = vpop.f32.mrb[0].mxu0
    %v317 = vadd.f32 0.0, %v316
    %v318 = vpop.f32.mrb[0].mxu0
    %319 = vmatprep.mubr.f32.mxu0 %v102
    %320 = vmatmul.mubr.f32.gmra.mrb[0].mxu0 %v101
    %v321 = vpop.f32.mrb[0].mxu0
    %v322 = vadd.f32 0.0, %v321
    %v323 = vpop.f32.mrb[0].mxu0
    %324 = vmatprep.mubr.f32.mxu0 %v104
    %325 = vmatmul.mubr.f32.gmra.mrb[0].mxu0 %v103
    %v326 = vpop.f32.mrb[0].mxu0
    %v327 = vadd.f32 0.0, %v326
    %v328 = vpop.f32.mrb[0].mxu0
    %329 = vmatprep.mubr.f32.mxu0 %v106
    %330 = vmatmul.mubr.f32.gmra.mrb[0].mxu0 %v105
    %v331 = vpop.f32.mrb[0].mxu0
    %v332 = vadd.f32 0.0, %v331
    %v333 = vpop.f32.mrb[0].mxu0
    %334 = vmatprep.mubr.f32.mxu0 %v108
    %335 = vmatmul.mubr.f32.gmra.mrb[0].mxu0 %v107
    %v336 = vpop.f32.mrb[0].mxu0
    %v337 = vadd.f32 0.0, %v336
    %v338 = vpop.f32.mrb[0].mxu0
    %339 = vmatprep.mubr.f32.mxu0 %v110
    %340 = vmatmul.mubr.f32.gmra.mrb[0].mxu0 %v109
    %v341 = vpop.f32.mrb[0].mxu0
    %v342 = vadd.f32 0.0, %v341
    %v343 = vpop.f32.mrb[0].mxu0
    %344 = vmatprep.mubr.f32.mxu0 %v112
    %345 = vmatmul.mubr.f32.gmra.mrb[0].mxu0 %v111
    %v346 = vpop.f32.mrb[0].mxu0
    %v347 = vadd.f32 0.0, %v346
    %v348 = vpop.f32.mrb[0].mxu0
    %349 = vmatprep.mubr.f32.mxu0 %v114
    %350 = vmatmul.mubr.f32.gmra.mrb[0].mxu0 %v113
    %v351 = vpop.f32.mrb[0].mxu0
    %v352 = vadd.f32 0.0, %v351
    %v353 = vpop.f32.mrb[0].mxu0
    %354 = vmatprep.mubr.f32.mxu0 %v116
    %355 = vmatmul.mubr.f32.gmra.mrb[0].mxu0 %v115
    %v356 = vpop.f32.mrb[0].mxu0
    %v357 = vadd.f32 0.0, %v356
    %v358 = vpop.f32.mrb[0].mxu0
    %359 = vmatprep.mubr.f32.mxu0 %v118
    %360 = vmatmul.mubr.f32.gmra.mrb[0].mxu0 %v117
    %v361 = vpop.f32.mrb[0].mxu0
    %v362 = vadd.f32 0.0, %v361
    %v363 = vpop.f32.mrb[0].mxu0
    %364 = vmatprep.mubr.f32.mxu0 %v120
    %365 = vmatmul.mubr.f32.gmra.mrb[0].mxu0 %v119
    %v366 = vpop.f32.mrb[0].mxu0
    %v367 = vadd.f32 0.0, %v366
    %v368 = vpop.f32.mrb[0].mxu0
    %369 = vmatprep.mubr.f32.mxu0 %v122
    %370 = vmatmul.mubr.f32.gmra.mrb[0].mxu0 %v121
    %v371 = vpop.f32.mrb[0].mxu0
    %v372 = vadd.f32 0.0, %v371
    %v373 = vpop.f32.mrb[0].mxu0
    %374 = vmatprep.mubr.f32.mxu0 %v124
    %375 = vmatmul.mubr.f32.gmra.mrb[0].mxu0 %v123
    %v376 = vpop.f32.mrb[0].mxu0
    %v377 = vadd.f32 0.0, %v376
    %v378 = vpop.f32.mrb[0].mxu0
    %379 = vmatprep.mubr.f32.mxu0 %v126
    %380 = vmatmul.mubr.f32.gmra.mrb[0].mxu0 %v125
    %v381 = vpop.f32.mrb[0].mxu0
    %v382 = vadd.f32 0.0, %v381
    %v383 = vpop.f32.mrb[0].mxu0
    %384 = vmatprep.mubr.f32.mxu0 %v128
    %385 = vmatmul.mubr.f32.gmra.mrb[0].mxu0 %v127
    %v386 = vpop.f32.mrb[0].mxu0
    %v387 = vadd.f32 0.0, %v386
    %v388 = vpop.f32.mrb[0].mxu0
    %389 = vmatprep.mubr.f32.mxu0 %v130
    %390 = vmatmul.mubr.f32.gmra.mrb[0].mxu0 %v129
    %v391 = vpop.f32.mrb[0].mxu0
    %v392 = vadd.f32 0.0, %v391
    %v393 = vpop.f32.mrb[0].mxu0
    %394 = vmatprep.mubr.f32.mxu0 %v132
    %395 = vmatmul.mubr.f32.gmra.mrb[0].mxu0 %v131
    %v396 = vpop.f32.mrb[0].mxu0
    %v397 = vadd.f32 0.0, %v396
    %v398 = vpop.f32.mrb[0].mxu0
    %399 = vmatprep.mubr.f32.mxu0 %v134
    %400 = vmatmul.mubr.f32.gmra.mrb[0].mxu0 %v133
    %v401 = vpop.f32.mrb[0].mxu0
    %v402 = vadd.f32 0.0, %v401
    %v403 = vpop.f32.mrb[0].mxu0
    %404 = vmatprep.mubr.f32.mxu0 %v136
    %405 = vmatmul.mubr.f32.gmra.mrb[0].mxu0 %v135
    %v406 = vpop.f32.mrb[0].mxu0
    %v407 = vadd.f32 0.0, %v406
    %v408 = vpop.f32.mrb[0].mxu0
    %409 = vdwg.mxu0
    %410 = vmatprep.subr.mxu0 0.0
    %411 = vmatpush1.msra.mxu0 %v169
    %412 = vmatprep.subr.mxu0 0.0
    %413 = vmatpush1.msra.mxu0 %v170
    %414 = vmatprep.subr.mxu0 0.0
    %415 = vmatpush1.msra.mxu0 %v171
    %416 = vmatprep.subr.mxu0 0.0
    %417 = vmatpush1.msra.mxu0 %v172
    %418 = vmatprep.subr.mxu0 0.0
    %419 = vmatpush1.msra.mxu0 %v173
    %420 = vmatprep.subr.mxu0 0.0
    %421 = vmatpush1.msra.mxu0 %v174
    %422 = vmatprep.subr.mxu0 0.0
    %423 = vmatpush1.msra.mxu0 %v175
    %424 = vmatprep.subr.mxu0 0.0
    %425 = vmatpush1.msra.mxu0 %v176
    %426 = vmatprep.subr.mxu0 0.0
    %427 = vmatpush1.msra.mxu0 %v177
    %428 = vmatprep.subr.mxu0 0.0
    %429 = vmatpush1.msra.mxu0 %v178
    %430 = vmatprep.subr.mxu0 0.0
    %431 = vmatpush1.msra.mxu0 %v179
    %432 = vmatprep.subr.mxu0 0.0
    %433 = vmatpush1.msra.mxu0 %v180
    %434 = vmatprep.subr.mxu0 0.0
    %435 = vmatpush1.msra.mxu0 %v181
    %436 = vmatprep.subr.mxu0 0.0
    %437 = vmatpush1.msra.mxu0 %v182
    %438 = vmatprep.subr.mxu0 0.0
    %439 = vmatpush1.msra.mxu0 %v183
    %440 = vmatprep.subr.mxu0 0.0
    %441 = vmatpush1.msra.mxu0 %v184
    %442 = vmatprep.subr.mxu0 0.0
    %443 = vmatpush1.msra.mxu0 0.0
    %444 = vmatprep.subr.mxu0 0.0
    %445 = vmatpush1.msra.mxu0 0.0
    %446 = vmatprep.subr.mxu0 0.0
    %447 = vmatpush1.msra.mxu0 0.0
    %448 = vmatprep.subr.mxu0 0.0
    %449 = vmatpush1.msra.mxu0 0.0
    %450 = vmatprep.subr.mxu0 0.0
    %451 = vmatpush1.msra.mxu0 0.0
    %452 = vmatprep.subr.mxu0 0.0
    %453 = vmatpush1.msra.mxu0 0.0
    %454 = vmatprep.subr.mxu0 0.0
    %455 = vmatpush1.msra.mxu0 0.0
    %456 = vmatprep.subr.mxu0 0.0
    %457 = vmatpush1.msra.mxu0 0.0
    %458 = vmatprep.subr.mxu0 0.0
    %459 = vmatpush1.msra.mxu0 0.0
    %460 = vmatprep.subr.mxu0 0.0
    %461 = vmatpush1.msra.mxu0 0.0
    %462 = vmatprep.subr.mxu0 0.0
    %463 = vmatpush1.msra.mxu0 0.0
    %464 = vmatprep.subr.mxu0 0.0
    %465 = vmatpush1.msra.mxu0 0.0
    %466 = vmatprep.subr.mxu0 0.0
    %467 = vmatpush1.msra.mxu0 0.0
    %468 = vmatprep.subr.mxu0 0.0
    %469 = vmatpush1.msra.mxu0 0.0
    %470 = vmatprep.subr.mxu0 0.0
    %471 = vmatpush1.msra.mxu0 0.0
    %472 = vmatprep.subr.mxu0 0.0
    %473 = vmatpush1.msra.mxu0 0.0
    %474 = vmatprep.mubr.f32.mxu0 0.0
    %475 = vmatmul.mubr.f32.gmra.mrb[0].mxu0 %v252
    %v476 = vpop.f32.mrb[0].mxu0
    %v477 = vadd.f32 0.0, %v476
    %v478 = vpop.f32.mrb[0].mxu0
    %479 = vmatprep.mubr.f32.mxu0 0.0
    %480 = vmatmul.mubr.f32.gmra.mrb[0].mxu0 %v257
    %v481 = vpop.f32.mrb[0].mxu0
    %v482 = vadd.f32 0.0, %v481
    %v483 = vpop.f32.mrb[0].mxu0
    %484 = vmatprep.mubr.f32.mxu0 0.0
    %485 = vmatmul.mubr.f32.gmra.mrb[0].mxu0 %v262
    %v486 = vpop.f32.mrb[0].mxu0
    %v487 = vadd.f32 0.0, %v486
    %v488 = vpop.f32.mrb[0].mxu0
    %489 = vmatprep.mubr.f32.mxu0 0.0
    %490 = vmatmul.mubr.f32.gmra.mrb[0].mxu0 %v267
    %v491 = vpop.f32.mrb[0].mxu0
    %v492 = vadd.f32 0.0, %v491
    %v493 = vpop.f32.mrb[0].mxu0
    %494 = vmatprep.mubr.f32.mxu0 0.0
    %495 = vmatmul.mubr.f32.gmra.mrb[0].mxu0 %v272
    %v496 = vpop.f32.mrb[0].mxu0
    %v497 = vadd.f32 0.0, %v496
    %v498 = vpop.f32.mrb[0].mxu0
    %499 = vmatprep.mubr.f32.mxu0 0.0
    %500 = vmatmul.mubr.f32.gmra.mrb[0].mxu0 %v277
    %v501 = vpop.f32.mrb[0].mxu0
    %v502 = vadd.f32 0.0, %v501
    %v503 = vpop.f32.mrb[0].mxu0
    %504 = vmatprep.mubr.f32.mxu0 0.0
    %505 = vmatmul.mubr.f32.gmra.mrb[0].mxu0 %v282
    %v506 = vpop.f32.mrb[0].mxu0
    %v507 = vadd.f32 0.0, %v506
    %v508 = vpop.f32.mrb[0].mxu0
    %509 = vmatprep.mubr.f32.mxu0 0.0
    %510 = vmatmul.mubr.f32.gmra.mrb[0].mxu0 %v287
    %v511 = vpop.f32.mrb[0].mxu0
    %v512 = vadd.f32 0.0, %v511
    %v513 = vpop.f32.mrb[0].mxu0
    %514 = vmatprep.mubr.f32.mxu0 0.0
    %515 = vmatmul.mubr.f32.gmra.mrb[0].mxu0 %v292
    %v516 = vpop.f32.mrb[0].mxu0
    %v517 = vadd.f32 0.0, %v516
    %v518 = vpop.f32.mrb[0].mxu0
    %519 = vmatprep.mubr.f32.mxu0 0.0
    %520 = vmatmul.mubr.f32.gmra.mrb[0].mxu0 %v297
    %v521 = vpop.f32.mrb[0].mxu0
    %v522 = vadd.f32 0.0, %v521
    %v523 = vpop.f32.mrb[0].mxu0
    %524 = vmatprep.mubr.f32.mxu0 0.0
    %525 = vmatmul.mubr.f32.gmra.mrb[0].mxu0 %v302
    %v526 = vpop.f32.mrb[0].mxu0
    %v527 = vadd.f32 0.0, %v526
    %v528 = vpop.f32.mrb[0].mxu0
    %529 = vmatprep.mubr.f32.mxu0 0.0
    %530 = vmatmul.mubr.f32.gmra.mrb[0].mxu0 %v307
    %v531 = vpop.f32.mrb[0].mxu0
    %v532 = vadd.f32 0.0, %v531
    %v533 = vpop.f32.mrb[0].mxu0
    %534 = vmatprep.mubr.f32.mxu0 0.0
    %535 = vmatmul.mubr.f32.gmra.mrb[0].mxu0 %v312
    %v536 = vpop.f32.mrb[0].mxu0
    %v537 = vadd.f32 0.0, %v536
    %v538 = vpop.f32.mrb[0].mxu0
    %539 = vmatprep.mubr.f32.mxu0 0.0
    %540 = vmatmul.mubr.f32.gmra.mrb[0].mxu0 %v317
    %v541 = vpop.f32.mrb[0].mxu0
    %v542 = vadd.f32 0.0, %v541
    %v543 = vpop.f32.mrb[0].mxu0
    %544 = vmatprep.mubr.f32.mxu0 0.0
    %545 = vmatmul.mubr.f32.gmra.mrb[0].mxu0 %v322
    %v546 = vpop.f32.mrb[0].mxu0
    %v547 = vadd.f32 0.0, %v546
    %v548 = vpop.f32.mrb[0].mxu0
    %549 = vmatprep.mubr.f32.mxu0 0.0
    %550 = vmatmul.mubr.f32.gmra.mrb[0].mxu0 %v327
    %v551 = vpop.f32.mrb[0].mxu0
    %v552 = vadd.f32 0.0, %v551
    %v553 = vpop.f32.mrb[0].mxu0
    %554 = vmatprep.mubr.f32.mxu0 0.0
    %555 = vmatmul.mubr.f32.gmra.mrb[0].mxu0 %v332
    %v556 = vpop.f32.mrb[0].mxu0
    %v557 = vadd.f32 0.0, %v556
    %v558 = vpop.f32.mrb[0].mxu0
    %559 = vmatprep.mubr.f32.mxu0 0.0
    %560 = vmatmul.mubr.f32.gmra.mrb[0].mxu0 %v337
    %v561 = vpop.f32.mrb[0].mxu0
    %v562 = vadd.f32 0.0, %v561
    %v563 = vpop.f32.mrb[0].mxu0
    %564 = vmatprep.mubr.f32.mxu0 0.0
    %565 = vmatmul.mubr.f32.gmra.mrb[0].mxu0 %v342
    %v566 = vpop.f32.mrb[0].mxu0
    %v567 = vadd.f32 0.0, %v566
    %v568 = vpop.f32.mrb[0].mxu0
    %569 = vmatprep.mubr.f32.mxu0 0.0
    %570 = vmatmul.mubr.f32.gmra.mrb[0].mxu0 %v347
    %v571 = vpop.f32.mrb[0].mxu0
    %v572 = vadd.f32 0.0, %v571
    %v573 = vpop.f32.mrb[0].mxu0
    %574 = vmatprep.mubr.f32.mxu0 0.0
    %575 = vmatmul.mubr.f32.gmra.mrb[0].mxu0 %v352
    %v576 = vpop.f32.mrb[0].mxu0
    %v577 = vadd.f32 0.0, %v576
    %v578 = vpop.f32.mrb[0].mxu0
    %579 = vmatprep.mubr.f32.mxu0 0.0
    %580 = vmatmul.mubr.f32.gmra.mrb[0].mxu0 %v357
    %v581 = vpop.f32.mrb[0].mxu0
    %v582 = vadd.f32 0.0, %v581
    %v583 = vpop.f32.mrb[0].mxu0
    %584 = vmatprep.mubr.f32.mxu0 0.0
    %585 = vmatmul.mubr.f32.gmra.mrb[0].mxu0 %v362
    %v586 = vpop.f32.mrb[0].mxu0
    %v587 = vadd.f32 0.0, %v586
    %v588 = vpop.f32.mrb[0].mxu0
    %589 = vmatprep.mubr.f32.mxu0 0.0
    %590 = vmatmul.mubr.f32.gmra.mrb[0].mxu0 %v367
    %v591 = vpop.f32.mrb[0].mxu0
    %v592 = vadd.f32 0.0, %v591
    %v593 = vpop.f32.mrb[0].mxu0
    %594 = vmatprep.mubr.f32.mxu0 0.0
    %595 = vmatmul.mubr.f32.gmra.mrb[0].mxu0 %v372
    %v596 = vpop.f32.mrb[0].mxu0
    %v597 = vadd.f32 0.0, %v596
    %v598 = vpop.f32.mrb[0].mxu0
    %599 = vmatprep.mubr.f32.mxu0 0.0
    %600 = vmatmul.mubr.f32.gmra.mrb[0].mxu0 %v377
    %v601 = vpop.f32.mrb[0].mxu0
    %v602 = vadd.f32 0.0, %v601
    %v603 = vpop.f32.mrb[0].mxu0
    %604 = vmatprep.mubr.f32.mxu0 0.0
    %605 = vmatmul.mubr.f32.gmra.mrb[0].mxu0 %v382
    %v606 = vpop.f32.mrb[0].mxu0
    %v607 = vadd.f32 0.0, %v606
    %v608 = vpop.f32.mrb[0].mxu0
    %609 = vmatprep.mubr.f32.mxu0 0.0
    %610 = vmatmul.mubr.f32.gmra.mrb[0].mxu0 %v387
    %v611 = vpop.f32.mrb[0].mxu0
    %v612 = vadd.f32 0.0, %v611
    %v613 = vpop.f32.mrb[0].mxu0
    %614 = vmatprep.mubr.f32.mxu0 0.0
    %615 = vmatmul.mubr.f32.gmra.mrb[0].mxu0 %v392
    %v616 = vpop.f32.mrb[0].mxu0
    %v617 = vadd.f32 0.0, %v616
    %v618 = vpop.f32.mrb[0].mxu0
    %619 = vmatprep.mubr.f32.mxu0 0.0
    %620 = vmatmul.mubr.f32.gmra.mrb[0].mxu0 %v397
    %v621 = vpop.f32.mrb[0].mxu0
    %v622 = vadd.f32 0.0, %v621
    %v623 = vpop.f32.mrb[0].mxu0
    %624 = vmatprep.mubr.f32.mxu0 0.0
    %625 = vmatmul.mubr.f32.gmra.mrb[0].mxu0 %v402
    %v626 = vpop.f32.mrb[0].mxu0
    %v627 = vadd.f32 0.0, %v626
    %v628 = vpop.f32.mrb[0].mxu0
    %629 = vmatprep.mubr.f32.mxu0 0.0
    %630 = vmatmul.mubr.f32.gmra.mrb[0].mxu0 %v407
    %v631 = vpop.f32.mrb[0].mxu0
    %v632 = vadd.f32 0.0, %v631
    %v633 = vpop.f32.mrb[0].mxu0
    %634 = vdwg.mxu0
    %v635 = vmax.f32 %v477, 0.0
    %v636 = vmax.f32 %v482, 0.0
    %v637 = vmax.f32 %v487, 0.0
    %v638 = vmax.f32 %v492, 0.0
    %v639 = vmax.f32 %v497, 0.0
    %v640 = vmax.f32 %v502, 0.0
    %v641 = vmax.f32 %v507, 0.0
    %v642 = vmax.f32 %v512, 0.0
    %v643 = vmax.f32 %v517, 0.0
    %v644 = vmax.f32 %v522, 0.0
    %v645 = vmax.f32 %v527, 0.0
    %v646 = vmax.f32 %v532, 0.0
    %v647 = vmax.f32 %v537, 0.0
    %v648 = vmax.f32 %v542, 0.0
    %v649 = vmax.f32 %v547, 0.0
    %v650 = vmax.f32 %v552, 0.0
    %v651 = vmax.f32 %v557, 0.0
    %v652 = vmax.f32 %v562, 0.0
    %v653 = vmax.f32 %v567, 0.0
    %v654 = vmax.f32 %v572, 0.0
    %v655 = vmax.f32 %v577, 0.0
    %v656 = vmax.f32 %v582, 0.0
    %v657 = vmax.f32 %v587, 0.0
    %v658 = vmax.f32 %v592, 0.0
    %v659 = vmax.f32 %v597, 0.0
    %v660 = vmax.f32 %v602, 0.0
    %v661 = vmax.f32 %v607, 0.0
    %v662 = vmax.f32 %v612, 0.0
    %v663 = vmax.f32 %v617, 0.0
    %v664 = vmax.f32 %v622, 0.0
    %v665 = vmax.f32 %v627, 0.0
    %v666 = vmax.f32 %v632, 0.0
    %v667 = vld [vmem:[#allocation8] sm:$0xff]
    %v668 = vld [vmem:[#allocation8 + $0x8] sm:$0xff]
    %v669 = vld [vmem:[#allocation8 + $0x10] sm:$0xff]
    %v670 = vld [vmem:[#allocation8 + $0x18] sm:$0xff]
    %v671 = vld [vmem:[#allocation8 + $0x20] sm:$0xff]
    %v672 = vld [vmem:[#allocation8 + $0x28] sm:$0xff]
    %v673 = vld [vmem:[#allocation8 + $0x30] sm:$0xff]
    %v674 = vld [vmem:[#allocation8 + $0x38] sm:$0xff]
    %v675 = vld [vmem:[#allocation8 + $0x40] sm:$0xff]
    %v676 = vld [vmem:[#allocation8 + $0x48] sm:$0xff]
    %v677 = vld [vmem:[#allocation8 + $0x50] sm:$0xff]
    %v678 = vld [vmem:[#allocation8 + $0x58] sm:$0xff]
    %v679 = vld [vmem:[#allocation8 + $0x60] sm:$0xff]
    %v680 = vld [vmem:[#allocation8 + $0x68] sm:$0xff]
    %v681 = vld [vmem:[#allocation8 + $0x70] sm:$0xff]
    %v682 = vld [vmem:[#allocation8 + $0x78] sm:$0xff]
    %683 = vmatprep.subr.mxu0 0.0
    %684 = vmatpush1.msra.mxu0 %v635
    %685 = vmatprep.subr.mxu0 0.0
    %686 = vmatpush1.msra.mxu0 %v636
    %687 = vmatprep.subr.mxu0 0.0
    %688 = vmatpush1.msra.mxu0 %v637
    %689 = vmatprep.subr.mxu0 0.0
    %690 = vmatpush1.msra.mxu0 %v638
    %691 = vmatprep.subr.mxu0 0.0
    %692 = vmatpush1.msra.mxu0 %v639
    %693 = vmatprep.subr.mxu0 0.0
    %694 = vmatpush1.msra.mxu0 %v640
    %695 = vmatprep.subr.mxu0 0.0
    %696 = vmatpush1.msra.mxu0 %v641
    %697 = vmatprep.subr.mxu0 0.0
    %698 = vmatpush1.msra.mxu0 %v642
    %699 = vmatprep.subr.mxu0 0.0
    %700 = vmatpush1.msra.mxu0 %v643
    %701 = vmatprep.subr.mxu0 0.0
    %702 = vmatpush1.msra.mxu0 %v644
    %703 = vmatprep.subr.mxu0 0.0
    %704 = vmatpush1.msra.mxu0 %v645
    %705 = vmatprep.subr.mxu0 0.0
    %706 = vmatpush1.msra.mxu0 %v646
    %707 = vmatprep.subr.mxu0 0.0
    %708 = vmatpush1.msra.mxu0 %v647
    %709 = vmatprep.subr.mxu0 0.0
    %710 = vmatpush1.msra.mxu0 %v648
    %711 = vmatprep.subr.mxu0 0.0
    %712 = vmatpush1.msra.mxu0 %v649
    %713 = vmatprep.subr.mxu0 0.0
    %714 = vmatpush1.msra.mxu0 %v650
    %715 = vmatprep.subr.mxu0 0.0
    %716 = vmatpush1.msra.mxu0 %v651
    %717 = vmatprep.subr.mxu0 0.0
    %718 = vmatpush1.msra.mxu0 %v652
    %719 = vmatprep.subr.mxu0 0.0
    %720 = vmatpush1.msra.mxu0 %v653
    %721 = vmatprep.subr.mxu0 0.0
    %722 = vmatpush1.msra.mxu0 %v654
    %723 = vmatprep.subr.mxu0 0.0
    %724 = vmatpush1.msra.mxu0 %v655
    %725 = vmatprep.subr.mxu0 0.0
    %726 = vmatpush1.msra.mxu0 %v656
    %727 = vmatprep.subr.mxu0 0.0
    %728 = vmatpush1.msra.mxu0 %v657
    %729 = vmatprep.subr.mxu0 0.0
    %730 = vmatpush1.msra.mxu0 %v658
    %731 = vmatprep.subr.mxu0 0.0
    %732 = vmatpush1.msra.mxu0 %v659
    %733 = vmatprep.subr.mxu0 0.0
    %734 = vmatpush1.msra.mxu0 %v660
    %735 = vmatprep.subr.mxu0 0.0
    %736 = vmatpush1.msra.mxu0 %v661
    %737 = vmatprep.subr.mxu0 0.0
    %738 = vmatpush1.msra.mxu0 %v662
    %739 = vmatprep.subr.mxu0 0.0
    %740 = vmatpush1.msra.mxu0 %v663
    %741 = vmatprep.subr.mxu0 0.0
    %742 = vmatpush1.msra.mxu0 %v664
    %743 = vmatprep.subr.mxu0 0.0
    %744 = vmatpush1.msra.mxu0 %v665
    %745 = vmatprep.subr.mxu0 0.0
    %746 = vmatpush1.msra.mxu0 %v666
    %747 = vmatprep.mubr.f32.mxu0 %v74
    %748 = vmatmul.mubr.f32.gmra.mrb[0].mxu0 %v73
    %v749 = vpop.f32.mrb[0].mxu0
    %v750 = vadd.f32 0.0, %v749
    %v751 = vpop.f32.mrb[0].mxu0
    %752 = vmatprep.mubr.f32.mxu0 %v76
    %753 = vmatmul.mubr.f32.gmra.mrb[0].mxu0 %v75
    %v754 = vpop.f32.mrb[0].mxu0
    %v755 = vadd.f32 0.0, %v754
    %v756 = vpop.f32.mrb[0].mxu0
    %757 = vmatprep.mubr.f32.mxu0 %v78
    %758 = vmatmul.mubr.f32.gmra.mrb[0].mxu0 %v77
    %v759 = vpop.f32.mrb[0].mxu0
    %v760 = vadd.f32 0.0, %v759
    %v761 = vpop.f32.mrb[0].mxu0
    %762 = vmatprep.mubr.f32.mxu0 %v80
    %763 = vmatmul.mubr.f32.gmra.mrb[0].mxu0 %v79
    %v764 = vpop.f32.mrb[0].mxu0
    %v765 = vadd.f32 0.0, %v764
    %v766 = vpop.f32.mrb[0].mxu0
    %767 = vmatprep.mubr.f32.mxu0 %v82
    %768 = vmatmul.mubr.f32.gmra.mrb[0].mxu0 %v81
    %v769 = vpop.f32.mrb[0].mxu0
    %v770 = vadd.f32 0.0, %v769
    %v771 = vpop.f32.mrb[0].mxu0
    %772 = vmatprep.mubr.f32.mxu0 %v84
    %773 = vmatmul.mubr.f32.gmra.mrb[0].mxu0 %v83
    %v774 = vpop.f32.mrb[0].mxu0
    %v775 = vadd.f32 0.0, %v774
    %v776 = vpop.f32.mrb[0].mxu0
    %777 = vmatprep.mubr.f32.mxu0 %v86
    %778 = vmatmul.mubr.f32.gmra.mrb[0].mxu0 %v85
    %v779 = vpop.f32.mrb[0].mxu0
    %v780 = vadd.f32 0.0, %v779
    %v781 = vpop.f32.mrb[0].mxu0
    %782 = vmatprep.mubr.f32.mxu0 %v88
    %783 = vmatmul.mubr.f32.gmra.mrb[0].mxu0 %v87
    %v784 = vpop.f32.mrb[0].mxu0
    %v785 = vadd.f32 0.0, %v784
    %v786 = vpop.f32.mrb[0].mxu0
    %787 = vmatprep.mubr.f32.mxu0 %v90
    %788 = vmatmul.mubr.f32.gmra.mrb[0].mxu0 %v89
    %v789 = vpop.f32.mrb[0].mxu0
    %v790 = vadd.f32 0.0, %v789
    %v791 = vpop.f32.mrb[0].mxu0
    %792 = vmatprep.mubr.f32.mxu0 %v92
    %793 = vmatmul.mubr.f32.gmra.mrb[0].mxu0 %v91
    %v794 = vpop.f32.mrb[0].mxu0
    %v795 = vadd.f32 0.0, %v794
    %v796 = vpop.f32.mrb[0].mxu0
    %797 = vmatprep.mubr.f32.mxu0 %v94
    %798 = vmatmul.mubr.f32.gmra.mrb[0].mxu0 %v93
    %v799 = vpop.f32.mrb[0].mxu0
    %v800 = vadd.f32 0.0, %v799
    %v801 = vpop.f32.mrb[0].mxu0
    %802 = vmatprep.mubr.f32.mxu0 %v96
    %803 = vmatmul.mubr.f32.gmra.mrb[0].mxu0 %v95
    %v804 = vpop.f32.mrb[0].mxu0
    %v805 = vadd.f32 0.0, %v804
    %v806 = vpop.f32.mrb[0].mxu0
    %807 = vmatprep.mubr.f32.mxu0 %v98
    %808 = vmatmul.mubr.f32.gmra.mrb[0].mxu0 %v97
    %v809 = vpop.f32.mrb[0].mxu0
    %v810 = vadd.f32 0.0, %v809
    %v811 = vpop.f32.mrb[0].mxu0
    %812 = vmatprep.mubr.f32.mxu0 %v100
    %813 = vmatmul.mubr.f32.gmra.mrb[0].mxu0 %v99
    %v814 = vpop.f32.mrb[0].mxu0
    %v815 = vadd.f32 0.0, %v814
    %v816 = vpop.f32.mrb[0].mxu0
    %817 = vmatprep.mubr.f32.mxu0 %v102
    %818 = vmatmul.mubr.f32.gmra.mrb[0].mxu0 %v101
    %v819 = vpop.f32.mrb[0].mxu0
    %v820 = vadd.f32 0.0, %v819
    %v821 = vpop.f32.mrb[0].mxu0
    %822 = vmatprep.mubr.f32.mxu0 %v104
    %823 = vmatmul.mubr.f32.gmra.mrb[0].mxu0 %v103
    %v824 = vpop.f32.mrb[0].mxu0
    %v825 = vadd.f32 0.0, %v824
    %v826 = vpop.f32.mrb[0].mxu0
    %827 = vmatprep.mubr.f32.mxu0 %v106
    %828 = vmatmul.mubr.f32.gmra.mrb[0].mxu0 %v105
    %v829 = vpop.f32.mrb[0].mxu0
    %v830 = vadd.f32 0.0, %v829
    %v831 = vpop.f32.mrb[0].mxu0
    %832 = vmatprep.mubr.f32.mxu0 %v108
    %833 = vmatmul.mubr.f32.gmra.mrb[0].mxu0 %v107
    %v834 = vpop.f32.mrb[0].mxu0
    %v835 = vadd.f32 0.0, %v834
    %v836 = vpop.f32.mrb[0].mxu0
    %837 = vmatprep.mubr.f32.mxu0 %v110
    %838 = vmatmul.mubr.f32.gmra.mrb[0].mxu0 %v109
    %v839 = vpop.f32.mrb[0].mxu0
    %v840 = vadd.f32 0.0, %v839
    %v841 = vpop.f32.mrb[0].mxu0
    %842 = vmatprep.mubr.f32.mxu0 %v112
    %843 = vmatmul.mubr.f32.gmra.mrb[0].mxu0 %v111
    %v844 = vpop.f32.mrb[0].mxu0
    %v845 = vadd.f32 0.0, %v844
    %v846 = vpop.f32.mrb[0].mxu0
    %847 = vmatprep.mubr.f32.mxu0 %v114
    %848 = vmatmul.mubr.f32.gmra.mrb[0].mxu0 %v113
    %v849 = vpop.f32.mrb[0].mxu0
    %v850 = vadd.f32 0.0, %v849
    %v851 = vpop.f32.mrb[0].mxu0
    %852 = vmatprep.mubr.f32.mxu0 %v116
    %853 = vmatmul.mubr.f32.gmra.mrb[0].mxu0 %v115
    %v854 = vpop.f32.mrb[0].mxu0
    %v855 = vadd.f32 0.0, %v854
    %v856 = vpop.f32.mrb[0].mxu0
    %857 = vmatprep.mubr.f32.mxu0 %v118
    %858 = vmatmul.mubr.f32.gmra.mrb[0].mxu0 %v117
    %v859 = vpop.f32.mrb[0].mxu0
    %v860 = vadd.f32 0.0, %v859
    %v861 = vpop.f32.mrb[0].mxu0
    %862 = vmatprep.mubr.f32.mxu0 %v120
    %863 = vmatmul.mubr.f32.gmra.mrb[0].mxu0 %v119
    %v864 = vpop.f32.mrb[0].mxu0
    %v865 = vadd.f32 0.0, %v864
    %v866 = vpop.f32.mrb[0].mxu0
    %867 = vmatprep.mubr.f32.mxu0 %v122
    %868 = vmatmul.mubr.f32.gmra.mrb[0].mxu0 %v121
    %v869 = vpop.f32.mrb[0].mxu0
    %v870 = vadd.f32 0.0, %v869
    %v871 = vpop.f32.mrb[0].mxu0
    %872 = vmatprep.mubr.f32.mxu0 %v124
    %873 = vmatmul.mubr.f32.gmra.mrb[0].mxu0 %v123
    %v874 = vpop.f32.mrb[0].mxu0
    %v875 = vadd.f32 0.0, %v874
    %v876 = vpop.f32.mrb[0].mxu0
    %877 = vmatprep.mubr.f32.mxu0 %v126
    %878 = vmatmul.mubr.f32.gmra.mrb[0].mxu0 %v125
    %v879 = vpop.f32.mrb[0].mxu0
    %v880 = vadd.f32 0.0, %v879
    %v881 = vpop.f32.mrb[0].mxu0
    %882 = vmatprep.mubr.f32.mxu0 %v128
    %883 = vmatmul.mubr.f32.gmra.mrb[0].mxu0 %v127
    %v884 = vpop.f32.mrb[0].mxu0
    %v885 = vadd.f32 0.0, %v884
    %v886 = vpop.f32.mrb[0].mxu0
    %887 = vmatprep.mubr.f32.mxu0 %v130
    %888 = vmatmul.mubr.f32.gmra.mrb[0].mxu0 %v129
    %v889 = vpop.f32.mrb[0].mxu0
    %v890 = vadd.f32 0.0, %v889
    %v891 = vpop.f32.mrb[0].mxu0
    %892 = vmatprep.mubr.f32.mxu0 %v132
    %893 = vmatmul.mubr.f32.gmra.mrb[0].mxu0 %v131
    %v894 = vpop.f32.mrb[0].mxu0
    %v895 = vadd.f32 0.0, %v894
    %v896 = vpop.f32.mrb[0].mxu0
    %897 = vmatprep.mubr.f32.mxu0 %v134
    %898 = vmatmul.mubr.f32.gmra.mrb[0].mxu0 %v133
    %v899 = vpop.f32.mrb[0].mxu0
    %v900 = vadd.f32 0.0, %v899
    %v901 = vpop.f32.mrb[0].mxu0
    %902 = vmatprep.mubr.f32.mxu0 %v136
    %903 = vmatmul.mubr.f32.gmra.mrb[0].mxu0 %v135
    %v904 = vpop.f32.mrb[0].mxu0
    %v905 = vadd.f32 0.0, %v904
    %v906 = vpop.f32.mrb[0].mxu0
    %907 = vdwg.mxu0
    %908 = vmatprep.subr.mxu0 0.0
    %909 = vmatpush1.msra.mxu0 %v667
    %910 = vmatprep.subr.mxu0 0.0
    %911 = vmatpush1.msra.mxu0 %v668
    %912 = vmatprep.subr.mxu0 0.0
    %913 = vmatpush1.msra.mxu0 %v669
    %914 = vmatprep.subr.mxu0 0.0
    %915 = vmatpush1.msra.mxu0 %v670
    %916 = vmatprep.subr.mxu0 0.0
    %917 = vmatpush1.msra.mxu0 %v671
    %918 = vmatprep.subr.mxu0 0.0
    %919 = vmatpush1.msra.mxu0 %v672
    %920 = vmatprep.subr.mxu0 0.0
    %921 = vmatpush1.msra.mxu0 %v673
    %922 = vmatprep.subr.mxu0 0.0
    %923 = vmatpush1.msra.mxu0 %v674
    %924 = vmatprep.subr.mxu0 0.0
    %925 = vmatpush1.msra.mxu0 %v675
    %926 = vmatprep.subr.mxu0 0.0
    %927 = vmatpush1.msra.mxu0 %v676
    %928 = vmatprep.subr.mxu0 0.0
    %929 = vmatpush1.msra.mxu0 %v677
    %930 = vmatprep.subr.mxu0 0.0
    %931 = vmatpush1.msra.mxu0 %v678
    %932 = vmatprep.subr.mxu0 0.0
    %933 = vmatpush1.msra.mxu0 %v679
    %934 = vmatprep.subr.mxu0 0.0
    %935 = vmatpush1.msra.mxu0 %v680
    %936 = vmatprep.subr.mxu0 0.0
    %937 = vmatpush1.msra.mxu0 %v681
    %938 = vmatprep.subr.mxu0 0.0
    %939 = vmatpush1.msra.mxu0 %v682
    %940 = vmatprep.subr.mxu0 0.0
    %941 = vmatpush1.msra.mxu0 0.0
    %942 = vmatprep.subr.mxu0 0.0
    %943 = vmatpush1.msra.mxu0 0.0
    %944 = vmatprep.subr.mxu0 0.0
    %945 = vmatpush1.msra.mxu0 0.0
    %946 = vmatprep.subr.mxu0 0.0
    %947 = vmatpush1.msra.mxu0 0.0
    %948 = vmatprep.subr.mxu0 0.0
    %949 = vmatpush1.msra.mxu0 0.0
    %950 = vmatprep.subr.mxu0 0.0
    %951 = vmatpush1.msra.mxu0 0.0
    %952 = vmatprep.subr.mxu0 0.0
    %953 = vmatpush1.msra.mxu0 0.0
    %954 = vmatprep.subr.mxu0 0.0
    %955 = vmatpush1.msra.mxu0 0.0
    %956 = vmatprep.subr.mxu0 0.0
    %957 = vmatpush1.msra.mxu0 0.0
    %958 = vmatprep.subr.mxu0 0.0
    %959 = vmatpush1.msra.mxu0 0.0
    %960 = vmatprep.subr.mxu0 0.0
    %961 = vmatpush1.msra.mxu0 0.0
    %962 = vmatprep.subr.mxu0 0.0
    %963 = vmatpush1.msra.mxu0 0.0
    %964 = vmatprep.subr.mxu0 0.0
    %965 = vmatpush1.msra.mxu0 0.0
    %966 = vmatprep.subr.mxu0 0.0
    %967 = vmatpush1.msra.mxu0 0.0
    %968 = vmatprep.subr.mxu0 0.0
    %969 = vmatpush1.msra.mxu0 0.0
    %970 = vmatprep.subr.mxu0 0.0
    %971 = vmatpush1.msra.mxu0 0.0
    %972 = vmatprep.mubr.f32.mxu0 0.0
    %973 = vmatmul.mubr.f32.gmra.mrb[0].mxu0 %v750
    %v974 = vpop.f32.mrb[0].mxu0
    %v975 = vadd.f32 0.0, %v974
    %v976 = vpop.f32.mrb[0].mxu0
    %977 = vmatprep.mubr.f32.mxu0 0.0
    %978 = vmatmul.mubr.f32.gmra.mrb[0].mxu0 %v755
    %v979 = vpop.f32.mrb[0].mxu0
    %v980 = vadd.f32 0.0, %v979
    %v981 = vpop.f32.mrb[0].mxu0
    %982 = vmatprep.mubr.f32.mxu0 0.0
    %983 = vmatmul.mubr.f32.gmra.mrb[0].mxu0 %v760
    %v984 = vpop.f32.mrb[0].mxu0
    %v985 = vadd.f32 0.0, %v984
    %v986 = vpop.f32.mrb[0].mxu0
    %987 = vmatprep.mubr.f32.mxu0 0.0
    %988 = vmatmul.mubr.f32.gmra.mrb[0].mxu0 %v765
    %v989 = vpop.f32.mrb[0].mxu0
    %v990 = vadd.f32 0.0, %v989
    %v991 = vpop.f32.mrb[0].mxu0
    %992 = vmatprep.mubr.f32.mxu0 0.0
    %993 = vmatmul.mubr.f32.gmra.mrb[0].mxu0 %v770
    %v994 = vpop.f32.mrb[0].mxu0
    %v995 = vadd.f32 0.0, %v994
    %v996 = vpop.f32.mrb[0].mxu0
    %997 = vmatprep.mubr.f32.mxu0 0.0
    %998 = vmatmul.mubr.f32.gmra.mrb[0].mxu0 %v775
    %v999 = vpop.f32.mrb[0].mxu0
    %v1000 = vadd.f32 0.0, %v999
    %v1001 = vpop.f32.mrb[0].mxu0
    %1002 = vmatprep.mubr.f32.mxu0 0.0
    %1003 = vmatmul.mubr.f32.gmra.mrb[0].mxu0 %v780
    %v1004 = vpop.f32.mrb[0].mxu0
    %v1005 = vadd.f32 0.0, %v1004
    %v1006 = vpop.f32.mrb[0].mxu0
    %1007 = vmatprep.mubr.f32.mxu0 0.0
    %1008 = vmatmul.mubr.f32.gmra.mrb[0].mxu0 %v785
    %v1009 = vpop.f32.mrb[0].mxu0
    %v1010 = vadd.f32 0.0, %v1009
    %v1011 = vpop.f32.mrb[0].mxu0
    %1012 = vmatprep.mubr.f32.mxu0 0.0
    %1013 = vmatmul.mubr.f32.gmra.mrb[0].mxu0 %v790
    %v1014 = vpop.f32.mrb[0].mxu0
    %v1015 = vadd.f32 0.0, %v1014
    %v1016 = vpop.f32.mrb[0].mxu0
    %1017 = vmatprep.mubr.f32.mxu0 0.0
    %1018 = vmatmul.mubr.f32.gmra.mrb[0].mxu0 %v795
    %v1019 = vpop.f32.mrb[0].mxu0
    %v1020 = vadd.f32 0.0, %v1019
    %v1021 = vpop.f32.mrb[0].mxu0
    %1022 = vmatprep.mubr.f32.mxu0 0.0
    %1023 = vmatmul.mubr.f32.gmra.mrb[0].mxu0 %v800
    %v1024 = vpop.f32.mrb[0].mxu0
    %v1025 = vadd.f32 0.0, %v1024
    %v1026 = vpop.f32.mrb[0].mxu0
    %1027 = vmatprep.mubr.f32.mxu0 0.0
    %1028 = vmatmul.mubr.f32.gmra.mrb[0].mxu0 %v805
    %v1029 = vpop.f32.mrb[0].mxu0
    %v1030 = vadd.f32 0.0, %v1029
    %v1031 = vpop.f32.mrb[0].mxu0
    %1032 = vmatprep.mubr.f32.mxu0 0.0
    %1033 = vmatmul.mubr.f32.gmra.mrb[0].mxu0 %v810
    %v1034 = vpop.f32.mrb[0].mxu0
    %v1035 = vadd.f32 0.0, %v1034
    %v1036 = vpop.f32.mrb[0].mxu0
    %1037 = vmatprep.mubr.f32.mxu0 0.0
    %1038 = vmatmul.mubr.f32.gmra.mrb[0].mxu0 %v815
    %v1039 = vpop.f32.mrb[0].mxu0
    %v1040 = vadd.f32 0.0, %v1039
    %v1041 = vpop.f32.mrb[0].mxu0
    %1042 = vmatprep.mubr.f32.mxu0 0.0
    %1043 = vmatmul.mubr.f32.gmra.mrb[0].mxu0 %v820
    %v1044 = vpop.f32.mrb[0].mxu0
    %v1045 = vadd.f32 0.0, %v1044
    %v1046 = vpop.f32.mrb[0].mxu0
    %1047 = vmatprep.mubr.f32.mxu0 0.0
    %1048 = vmatmul.mubr.f32.gmra.mrb[0].mxu0 %v825
    %v1049 = vpop.f32.mrb[0].mxu0
    %v1050 = vadd.f32 0.0, %v1049
    %v1051 = vpop.f32.mrb[0].mxu0
    %1052 = vmatprep.mubr.f32.mxu0 0.0
    %1053 = vmatmul.mubr.f32.gmra.mrb[0].mxu0 %v830
    %v1054 = vpop.f32.mrb[0].mxu0
    %v1055 = vadd.f32 0.0, %v1054
    %v1056 = vpop.f32.mrb[0].mxu0
    %1057 = vmatprep.mubr.f32.mxu0 0.0
    %1058 = vmatmul.mubr.f32.gmra.mrb[0].mxu0 %v835
    %v1059 = vpop.f32.mrb[0].mxu0
    %v1060 = vadd.f32 0.0, %v1059
    %v1061 = vpop.f32.mrb[0].mxu0
    %1062 = vmatprep.mubr.f32.mxu0 0.0
    %1063 = vmatmul.mubr.f32.gmra.mrb[0].mxu0 %v840
    %v1064 = vpop.f32.mrb[0].mxu0
    %v1065 = vadd.f32 0.0, %v1064
    %v1066 = vpop.f32.mrb[0].mxu0
    %1067 = vmatprep.mubr.f32.mxu0 0.0
    %1068 = vmatmul.mubr.f32.gmra.mrb[0].mxu0 %v845
    %v1069 = vpop.f32.mrb[0].mxu0
    %v1070 = vadd.f32 0.0, %v1069
    %v1071 = vpop.f32.mrb[0].mxu0
    %1072 = vmatprep.mubr.f32.mxu0 0.0
    %1073 = vmatmul.mubr.f32.gmra.mrb[0].mxu0 %v850
    %v1074 = vpop.f32.mrb[0].mxu0
    %v1075 = vadd.f32 0.0, %v1074
    %v1076 = vpop.f32.mrb[0].mxu0
    %1077 = vmatprep.mubr.f32.mxu0 0.0
    %1078 = vmatmul.mubr.f32.gmra.mrb[0].mxu0 %v855
    %v1079 = vpop.f32.mrb[0].mxu0
    %v1080 = vadd.f32 0.0, %v1079
    %v1081 = vpop.f32.mrb[0].mxu0
    %1082 = vmatprep.mubr.f32.mxu0 0.0
    %1083 = vmatmul.mubr.f32.gmra.mrb[0].mxu0 %v860
    %v1084 = vpop.f32.mrb[0].mxu0
    %v1085 = vadd.f32 0.0, %v1084
    %v1086 = vpop.f32.mrb[0].mxu0
    %1087 = vmatprep.mubr.f32.mxu0 0.0
    %1088 = vmatmul.mubr.f32.gmra.mrb[0].mxu0 %v865
    %v1089 = vpop.f32.mrb[0].mxu0
    %v1090 = vadd.f32 0.0, %v1089
    %v1091 = vpop.f32.mrb[0].mxu0
    %1092 = vmatprep.mubr.f32.mxu0 0.0
    %1093 = vmatmul.mubr.f32.gmra.mrb[0].mxu0 %v870
    %v1094 = vpop.f32.mrb[0].mxu0
    %v1095 = vadd.f32 0.0, %v1094
    %v1096 = vpop.f32.mrb[0].mxu0
    %1097 = vmatprep.mubr.f32.mxu0 0.0
    %1098 = vmatmul.mubr.f32.gmra.mrb[0].mxu0 %v875
    %v1099 = vpop.f32.mrb[0].mxu0
    %v1100 = vadd.f32 0.0, %v1099
    %v1101 = vpop.f32.mrb[0].mxu0
    %1102 = vmatprep.mubr.f32.mxu0 0.0
    %1103 = vmatmul.mubr.f32.gmra.mrb[0].mxu0 %v880
    %v1104 = vpop.f32.mrb[0].mxu0
    %v1105 = vadd.f32 0.0, %v1104
    %v1106 = vpop.f32.mrb[0].mxu0
    %1107 = vmatprep.mubr.f32.mxu0 0.0
    %1108 = vmatmul.mubr.f32.gmra.mrb[0].mxu0 %v885
    %v1109 = vpop.f32.mrb[0].mxu0
    %v1110 = vadd.f32 0.0, %v1109
    %v1111 = vpop.f32.mrb[0].mxu0
    %1112 = vmatprep.mubr.f32.mxu0 0.0
    %1113 = vmatmul.mubr.f32.gmra.mrb[0].mxu0 %v890
    %v1114 = vpop.f32.mrb[0].mxu0
    %v1115 = vadd.f32 0.0, %v1114
    %v1116 = vpop.f32.mrb[0].mxu0
    %1117 = vmatprep.mubr.f32.mxu0 0.0
    %1118 = vmatmul.mubr.f32.gmra.mrb[0].mxu0 %v895
    %v1119 = vpop.f32.mrb[0].mxu0
    %v1120 = vadd.f32 0.0, %v1119
    %v1121 = vpop.f32.mrb[0].mxu0
    %1122 = vmatprep.mubr.f32.mxu0 0.0
    %1123 = vmatmul.mubr.f32.gmra.mrb[0].mxu0 %v900
    %v1124 = vpop.f32.mrb[0].mxu0
    %v1125 = vadd.f32 0.0, %v1124
    %v1126 = vpop.f32.mrb[0].mxu0
    %1127 = vmatprep.mubr.f32.mxu0 0.0
    %1128 = vmatmul.mubr.f32.gmra.mrb[0].mxu0 %v905
    %v1129 = vpop.f32.mrb[0].mxu0
    %v1130 = vadd.f32 0.0, %v1129
    %v1131 = vpop.f32.mrb[0].mxu0
    %1132 = vdwg.mxu0
    %1133 = vst [vmem:[#allocation10] sm:$0xff] %v975
    %1134 = vst [vmem:[#allocation10 + $0x8] sm:$0xff] %v980
    %1135 = vst [vmem:[#allocation10 + $0x10] sm:$0xff] %v985
    %1136 = vst [vmem:[#allocation10 + $0x18] sm:$0xff] %v990
    %1137 = vst [vmem:[#allocation10 + $0x20] sm:$0xff] %v995
    %1138 = vst [vmem:[#allocation10 + $0x28] sm:$0xff] %v1000
    %1139 = vst [vmem:[#allocation10 + $0x30] sm:$0xff] %v1005
    %1140 = vst [vmem:[#allocation10 + $0x38] sm:$0xff] %v1010
    %1141 = vst [vmem:[#allocation10 + $0x40] sm:$0xff] %v1015
    %1142 = vst [vmem:[#allocation10 + $0x48] sm:$0xff] %v1020
    %1143 = vst [vmem:[#allocation10 + $0x50] sm:$0xff] %v1025
    %1144 = vst [vmem:[#allocation10 + $0x58] sm:$0xff] %v1030
    %1145 = vst [vmem:[#allocation10 + $0x60] sm:$0xff] %v1035
    %1146 = vst [vmem:[#allocation10 + $0x68] sm:$0xff] %v1040
    %1147 = vst [vmem:[#allocation10 + $0x70] sm:$0xff] %v1045
    %1148 = vst [vmem:[#allocation10 + $0x78] sm:$0xff] %v1050
    %1149 = vst [vmem:[#allocation10 + $0x80] sm:$0xff] %v1055
    %1150 = vst [vmem:[#allocation10 + $0x88] sm:$0xff] %v1060
    %1151 = vst [vmem:[#allocation10 + $0x90] sm:$0xff] %v1065
    %1152 = vst [vmem:[#allocation10 + $0x98] sm:$0xff] %v1070
    %1153 = vst [vmem:[#allocation10 + $0xa0] sm:$0xff] %v1075
    %1154 = vst [vmem:[#allocation10 + $0xa8] sm:$0xff] %v1080
    %1155 = vst [vmem:[#allocation10 + $0xb0] sm:$0xff] %v1085
    %1156 = vst [vmem:[#allocation10 + $0xb8] sm:$0xff] %v1090
    %1157 = vst [vmem:[#allocation10 + $0xc0] sm:$0xff] %v1095
    %1158 = vst [vmem:[#allocation10 + $0xc8] sm:$0xff] %v1100
    %1159 = vst [vmem:[#allocation10 + $0xd0] sm:$0xff] %v1105
    %1160 = vst [vmem:[#allocation10 + $0xd8] sm:$0xff] %v1110
    %1161 = vst [vmem:[#allocation10 + $0xe0] sm:$0xff] %v1115
    %1162 = vst [vmem:[#allocation10 + $0xe8] sm:$0xff] %v1120
    %1163 = vst [vmem:[#allocation10 + $0xf0] sm:$0xff] %v1125
    %1164 = vst [vmem:[#allocation10 + $0xf8] sm:$0xff] %v1130
    // Predicated region
    $region34: #{_forward_padded.1} parent=1 // pred_check
      _
    $region35: #{_forward_padded.1} parent=1 // pred_check_branch
      %1166 = sbr.rel (0) target = $region37
    $region36: #{_forward_padded.1} parent=1 // pred_region
      %s1168 = ssub.s32 4096, 4096
      %1169 = vsyncadd [#allocation4], %s1168
      %s1170 = sshll.u32 [#allocation10], 4
      %s1171 = int_to_ptr.vmem [resolvable:$true] %s1170
      %1176 = dma.vmem_to_hbm [thread:$0]  %s1171, 4096, %s4, [#allocation4], 128, 128, 8
    $region37: #{_forward_padded.1} parent=1 // pred_fallthru
      _
    // Predicated region
    $region38: #{_forward_padded.1} parent=1 // pred_check
      _
    $region39: #{_forward_padded.1} parent=1 // pred_check_branch
      %1178 = sbr.rel (0) target = $region41
    $region40: #{_forward_padded.1} parent=1 // pred_region
      %1179 = dma.done [#allocation4], 4096
    $region41: #{_forward_padded.1} parent=1 // pred_fallthru
      _
    %1180 = vsyncpa [#allocation3], 1
    %1181 = vsyncpa [#allocation6], 1
    %1182 = vsyncpa [#allocation9], 1
    %1183 = vsyncpa [#allocation4], 1

</llo_original>
